<compile_context>
chip_gen: v7x
topology: tpu7x:2x2x1
jax: 0.10.0
libtpu: 0.0.40
codegen_flags: <defaults>
</compile_context>

<pallas_src>
import functools

import jax
import jax.numpy as jnp
from jax.experimental import pallas as pl
from jax.experimental.pallas import tpu as pltpu


def _round_up(v, m):
    return (v + m - 1) // m * m


def _tpu_budget():
    """(vmem_limit_bytes, max_tile) chosen per TPU generation."""
    try:
        vmem_bytes = int(pltpu.get_tpu_info().vmem_capacity_bytes)
    except Exception:
        vmem_bytes = 64 * 1024 * 1024  # conservative (v7x-like) fallback
    if vmem_bytes >= 100 * 1024 * 1024:          # v5e / v6e: 128 MiB physical
        return 96 * 1024 * 1024, 2048
    return 48 * 1024 * 1024, 1024                # v7x: 64 MiB physical


def _pick_tile(n_pad, max_tile):
    """Largest aligned tile dividing n_pad, keeping >=2 row blocks when possible."""
    for t in (2048, 1024, 512, 256, 128):
        if t > max_tile or t > n_pad or n_pad % t != 0:
            continue
        if n_pad >= 256 and n_pad // t < 2:      # keep both TCs busy on v7x
            continue
        return t
    return 128


# --------------------------------------------------------------------------
# Pass 1: feature transform  s1 = x @ W1   (weights resident, row panels tiled)
# --------------------------------------------------------------------------
def _transform_kernel(x_ref, w_ref, s_ref):
    s_ref[...] = jnp.dot(x_ref[...], w_ref[...],
                         preferred_element_type=jnp.float32)


def _feature_transform(x, w, tm, vmem_limit):
    n, f_in = x.shape
    f_out = w.shape[1]
    return pl.pallas_call(
        _transform_kernel,
        out_shape=jax.ShapeDtypeStruct((n, f_out), jnp.float32),
        grid_spec=pltpu.PrefetchScalarGridSpec(
            num_scalar_prefetch=0,
            grid=(n // tm,),
            in_specs=[pl.BlockSpec((tm, f_in), lambda i: (i, 0)),
                      pl.BlockSpec((f_in, f_out), lambda i: (0, 0))],
            out_specs=pl.BlockSpec((tm, f_out), lambda i: (i, 0)),
        ),
        compiler_params=pltpu.CompilerParams(
            dimension_semantics=("parallel",),
            vmem_limit_bytes=vmem_limit),
        cost_estimate=pl.CostEstimate(
            flops=2 * n * f_in * f_out,
            transcendentals=0,
            bytes_accessed=4 * (n * f_in + f_in * f_out + n * f_out)),
    )(x, w)


# --------------------------------------------------------------------------
# Pass 2 (fused gc1-aggregate + ReLU + gc4 feature transform):
#   s4 = relu(adj @ s1 + b1) @ W4
#   K-reduction over adj columns with an f32 VMEM accumulator (width h_pad),
#   W4 resident; the (tm, h_pad) x (h_pad, c_pad) matmul runs once per row
#   tile inside the k==last finalize and hides under the next tile's adj DMA.
# --------------------------------------------------------------------------
def _agg_relu_transform_kernel(adj_ref, s_ref, b_ref, w_ref, out_ref, acc_ref):
    k = pl.program_id(1)

    @pl.when(k == 0)
    def _():
        acc_ref[...] = jnp.zeros_like(acc_ref)

    acc_ref[...] += jnp.dot(adj_ref[...], s_ref[...],
                            preferred_element_type=jnp.float32)

    @pl.when(k == pl.num_programs(1) - 1)
    def _():
        h = jnp.maximum(acc_ref[...] + b_ref[...], 0.0)     # bias once per tile
        out_ref[...] = jnp.dot(h, w_ref[...],
                               preferred_element_type=jnp.float32)


def _aggregate_relu_transform(adj, s1, b1, w4, *, tm, tk, vmem_limit):
    n = adj.shape[0]
    h_pad = s1.shape[1]
    c_pad = w4.shape[1]
    return pl.pallas_call(
        _agg_relu_transform_kernel,
        out_shape=jax.ShapeDtypeStruct((n, c_pad), jnp.float32),
        grid_spec=pltpu.PrefetchScalarGridSpec(
            num_scalar_prefetch=0,
            grid=(n // tm, n // tk),
            in_specs=[pl.BlockSpec((tm, tk), lambda i, k: (i, k)),
                      pl.BlockSpec((tk, h_pad), lambda i, k: (k, 0)),
                      pl.BlockSpec((1, h_pad), lambda i, k: (0, 0)),
                      pl.BlockSpec((h_pad, c_pad), lambda i, k: (0, 0))],
            out_specs=pl.BlockSpec((tm, c_pad), lambda i, k: (i, 0)),
            scratch_shapes=[pltpu.VMEM((tm, h_pad), jnp.float32)]),
        compiler_params=pltpu.CompilerParams(
            dimension_semantics=("parallel", "arbitrary"),
            vmem_limit_bytes=vmem_limit),
        cost_estimate=pl.CostEstimate(
            flops=2 * n * n * h_pad + 2 * n * h_pad * c_pad,
            transcendentals=0,
            bytes_accessed=4 * (n * n + n * h_pad + n * c_pad
                                + h_pad + h_pad * c_pad)),
    )(adj, s1, b1, w4)


# --------------------------------------------------------------------------
# Pass 3: out = log_softmax(adj @ s4 + b4).  No scratch: the output block is
# VMEM-resident across the K axis (out_spec index (i, 0) for every k), so we
# zero it at k==0, accumulate in place, and finalize at k==last.
# --------------------------------------------------------------------------
def _agg_logsoftmax_kernel(adj_ref, s_ref, b_ref, out_ref, *, nvalid):
    k = pl.program_id(1)

    @pl.when(k == 0)
    def _():
        out_ref[...] = jnp.zeros_like(out_ref)

    out_ref[...] += jnp.dot(adj_ref[...], s_ref[...],
                            preferred_element_type=jnp.float32)

    @pl.when(k == pl.num_programs(1) - 1)
    def _():
        res = out_ref[...] + b_ref[...]
        # mask zero-padded class lanes so they don't pollute max/sum
        col = jax.lax.broadcasted_iota(jnp.int32, res.shape, 1)
        res = jnp.where(col < nvalid, res, -jnp.inf)
        m = jnp.max(res, axis=1, keepdims=True)
        z = res - m
        lse = jnp.log(jnp.sum(jnp.exp(z), axis=1, keepdims=True))
        out_ref[...] = z - lse


def _aggregate_logsoftmax(adj, s4, b4, *, nvalid, tm, tk, vmem_limit):
    n = adj.shape[0]
    c_pad = s4.shape[1]
    kernel = functools.partial(_agg_logsoftmax_kernel, nvalid=nvalid)
    return pl.pallas_call(
        kernel,
        out_shape=jax.ShapeDtypeStruct((n, c_pad), jnp.float32),
        grid_spec=pltpu.PrefetchScalarGridSpec(
            num_scalar_prefetch=0,
            grid=(n // tm, n // tk),
            in_specs=[pl.BlockSpec((tm, tk), lambda i, k: (i, k)),
                      pl.BlockSpec((tk, c_pad), lambda i, k: (k, 0)),
                      pl.BlockSpec((1, c_pad), lambda i, k: (0, 0))],
            out_specs=pl.BlockSpec((tm, c_pad), lambda i, k: (i, 0)),
        ),
        compiler_params=pltpu.CompilerParams(
            dimension_semantics=("parallel", "arbitrary"),
            vmem_limit_bytes=vmem_limit),
        cost_estimate=pl.CostEstimate(
            flops=2 * n * n * c_pad,
            transcendentals=n * c_pad,
            bytes_accessed=4 * (n * n + 2 * n * c_pad + c_pad)),
    )(adj, s4, b4)


# --------------------------------------------------------------------------
# Host-side padding (done ONCE, outside the forward, so repeated forwards do
# not re-materialize a padded adj-sized HBM copy each call).
# --------------------------------------------------------------------------
def _pad2(a, rows, cols):
    a = jnp.asarray(a, jnp.float32)
    if a.shape == (rows, cols):
        return a                          # already aligned: pass through
    return jnp.zeros((rows, cols), jnp.float32).at[:a.shape[0], :a.shape[1]].set(a)


def pad_gcn_inputs(x, adj, w1, b1, w4, b4):
    n, nfeat = x.shape
    nhid = w1.shape[1]
    nclass = w4.shape[1]
    n_pad = _round_up(n, 128)
    f_pad = _round_up(nfeat, 128)
    h_pad = _round_up(nhid, 128)
    c_pad = _round_up(nclass, 128)
    padded = (
        _pad2(x, n_pad, f_pad),
        _pad2(adj, n_pad, n_pad),
        _pad2(w1, f_pad, h_pad),
        _pad2(jnp.reshape(b1, (1, -1)), 1, h_pad),
        _pad2(w4, h_pad, c_pad),
        _pad2(jnp.reshape(b4, (1, -1)), 1, c_pad),
    )
    return padded, (n, nclass)


# --------------------------------------------------------------------------
# Full GCN forward on pre-padded inputs (matches the PyTorch module's forward:
# gc1 -> relu -> dropout(eval) -> gc4 -> log_softmax over dim=1)
# --------------------------------------------------------------------------
@functools.partial(jax.jit, static_argnames=("n", "nclass"))
def gcn_forward_padded(x_p, adj_p, w1_p, b1_p, w4_p, b4_p, *, n, nclass):
    n_pad = adj_p.shape[0]
    vmem_limit, max_tile = _tpu_budget()
    tm = _pick_tile(n_pad, max_tile)
    tk = tm

    # s1 = x @ W1
    s1 = _feature_transform(x_p, w1_p, tm, vmem_limit)

    # TODO(synk): F.dropout(training=False) is the identity at inference;
    #             add a pltpu.prng_* Bernoulli mask here for training mode.

    # fused: s4 = relu(adj @ s1 + b1) @ W4   (h never touches HBM)
    s4 = _aggregate_relu_transform(adj_p, s1, b1_p, w4_p,
                                   tm=tm, tk=tk, vmem_limit=vmem_limit)

    # out = log_softmax(adj @ s4 + b4)
    out_p = _aggregate_logsoftmax(adj_p, s4, b4_p, nvalid=nclass,
                                  tm=tm, tk=tk, vmem_limit=vmem_limit)

    return out_p[:n, :nclass]


def gcn_forward(x, adj, w1, b1, w4, b4):
    padded, (n, nclass) = pad_gcn_inputs(x, adj, w1, b1, w4, b4)
    return gcn_forward_padded(*padded, n=n, nclass=nclass)


def reference_forward(x, adj, w1, b1, w4, b4):
    h = jnp.maximum(adj @ (x @ w1) + b1, 0.0)
    logits = adj @ (h @ w4) + b4
    return jax.nn.log_softmax(logits, axis=1)


if __name__ == "__main__":
    # Small shapes consistent with the module: N nodes, nfeat, nhid, nclass
    N, nfeat, nhid, nclass = 16, 8, 32, 4

    key = jax.random.PRNGKey(0)
    kx, kadj, kw1, kb1, kw4, kb4 = jax.random.split(key, 6)

    x = jax.random.normal(kx, (N, nfeat), dtype=jnp.float32)

    # symmetric, row-normalized adjacency (with self-loops), as typical for GCN
    a = (jax.random.uniform(kadj, (N, N)) > 0.7).astype(jnp.float32)
    a = jnp.maximum(a, a.T) + jnp.eye(N, dtype=jnp.float32)
    a = a / jnp.sum(a, axis=1, keepdims=True)

    # deterministic parameter init (GraphConvolution uses uniform(-stdv, stdv))
    stdv1 = 1.0 / jnp.sqrt(jnp.float32(nhid))
    stdv4 = 1.0 / jnp.sqrt(jnp.float32(nclass))
    w1 = jax.random.uniform(kw1, (nfeat, nhid), minval=-stdv1, maxval=stdv1, dtype=jnp.float32)
    b1 = jax.random.uniform(kb1, (1, nhid), minval=-stdv1, maxval=stdv1, dtype=jnp.float32)
    w4 = jax.random.uniform(kw4, (nhid, nclass), minval=-stdv4, maxval=stdv4, dtype=jnp.float32)
    b4 = jax.random.uniform(kb4, (1, nclass), minval=-stdv4, maxval=stdv4, dtype=jnp.float32)

    # pad once (outside the forward), then run the jitted padded forward
    padded, (n_nodes, n_cls) = pad_gcn_inputs(x, a, w1, b1, w4, b4)
    out = gcn_forward_padded(*padded, n=n_nodes, nclass=n_cls)
    out = jax.block_until_ready(out)

    ref = reference_forward(x, a, w1, b1, w4, b4)
    assert out.shape == (N, nclass)
    assert jnp.allclose(out, ref, atol=1e-5, rtol=1e-5)

    print("KERNEL_OK")
</pallas_src>

<mosaic_0001>
module attributes {stable_mosaic.version = 11 : i64} {
  func.func @_agg_relu_transform_kernel(%arg0: i32, %arg1: i32, %arg2: memref<128x128xf32, #tpu.memory_space<vmem>>, %arg3: memref<128x128xf32, #tpu.memory_space<vmem>>, %arg4: memref<1x128xf32, #tpu.memory_space<vmem>>, %arg5: memref<128x128xf32, #tpu.memory_space<vmem>>, %arg6: memref<128x128xf32, #tpu.memory_space<vmem>>, %arg7: memref<128x128xf32, #tpu.memory_space<vmem>>) attributes {dimension_semantics = [#tpu.dimension_semantics<parallel>, #tpu.dimension_semantics<arbitrary>], iteration_bounds = array<i64: 1, 1>, scalar_prefetch = 0 : i64, scratch_operands = 1 : i64, tpu.core_type = #tpu.core_type<tc>, window_params = [{transform_indices = @transform_0, window_bounds = array<i64: 128, 128>}, {transform_indices = @transform_1, window_bounds = array<i64: 128, 128>}, {pipeline_mode = #tpu.pipeline_mode<synchronous>, transform_indices = @transform_2, window_bounds = array<i64: 1, 128>}, {pipeline_mode = #tpu.pipeline_mode<synchronous>, transform_indices = @transform_3, window_bounds = array<i64: 128, 128>}, {transform_indices = @transform_4, window_bounds = array<i64: 128, 128>}]} {
    %c0_i32 = arith.constant 0 : i32
    %0 = arith.cmpi eq, %arg1, %c0_i32 : i32
    %1 = arith.extui %0 : i1 to i32
    %c0_i32_0 = arith.constant 0 : i32
    %2 = arith.cmpi ne, %1, %c0_i32_0 : i32
    scf.if %2 {
      %cst_10 = arith.constant 0.000000e+00 : f32
      %12 = vector.broadcast %cst_10 : f32 to vector<128x128xf32>
      %c0_11 = arith.constant 0 : index
      %c0_12 = arith.constant 0 : index
      %13 = vector.load %arg7[%c0_11, %c0_12] : memref<128x128xf32, #tpu.memory_space<vmem>>, vector<128x128xf32>
      tpu.vector_store %arg7[%c0_11, %c0_12], %12 {strides = array<i32>} : memref<128x128xf32, #tpu.memory_space<vmem>>, vector<128x128xf32>,
    } else {
    }
    %c0 = arith.constant 0 : index
    %c0_1 = arith.constant 0 : index
    %3 = vector.load %arg7[%c0, %c0_1] : memref<128x128xf32, #tpu.memory_space<vmem>>, vector<128x128xf32>
    %c0_2 = arith.constant 0 : index
    %c0_3 = arith.constant 0 : index
    %4 = vector.load %arg2[%c0_2, %c0_3] : memref<128x128xf32, #tpu.memory_space<vmem>>, vector<128x128xf32>
    %c0_4 = arith.constant 0 : index
    %c0_5 = arith.constant 0 : index
    %5 = vector.load %arg3[%c0_4, %c0_5] : memref<128x128xf32, #tpu.memory_space<vmem>>, vector<128x128xf32>
    %cst = arith.constant dense<0.000000e+00> : vector<128x128xf32>
    %6 = tpu.matmul %4, %5, %cst {dimension_numbers = #tpu.dot_dimension_numbers<[1], [0], [0], [1], [0, 0, 1, 1], [], []>} : vector<128x128xf32>, vector<128x128xf32>, vector<128x128xf32> -> vector<128x128xf32>
    %7 = arith.addf %3, %6 : vector<128x128xf32>
    %c0_6 = arith.constant 0 : index
    %c0_7 = arith.constant 0 : index
    %8 = vector.load %arg7[%c0_6, %c0_7] : memref<128x128xf32, #tpu.memory_space<vmem>>, vector<128x128xf32>
    tpu.vector_store %arg7[%c0_6, %c0_7], %7 {strides = array<i32>} : memref<128x128xf32, #tpu.memory_space<vmem>>, vector<128x128xf32>,
    %c0_i32_8 = arith.constant 0 : i32
    %9 = arith.cmpi eq, %arg1, %c0_i32_8 : i32
    %10 = arith.extui %9 : i1 to i32
    %c0_i32_9 = arith.constant 0 : i32
    %11 = arith.cmpi ne, %10, %c0_i32_9 : i32
    scf.if %11 {
      %c0_10 = arith.constant 0 : index
      %c0_11 = arith.constant 0 : index
      %12 = vector.load %arg7[%c0_10, %c0_11] : memref<128x128xf32, #tpu.memory_space<vmem>>, vector<128x128xf32>
      %c0_12 = arith.constant 0 : index
      %c0_13 = arith.constant 0 : index
      %13 = vector.load %arg4[%c0_12, %c0_13] : memref<1x128xf32, #tpu.memory_space<vmem>>, vector<1x128xf32>
      %14 = vector.broadcast %13 : vector<1x128xf32> to vector<128x128xf32>
      %15 = arith.addf %12, %14 : vector<128x128xf32>
      %cst_14 = arith.constant 0.000000e+00 : f32
      %16 = vector.broadcast %cst_14 : f32 to vector<128x128xf32>
      %17 = arith.maximumf %15, %16 : vector<128x128xf32>
      %c0_15 = arith.constant 0 : index
      %c0_16 = arith.constant 0 : index
      %18 = vector.load %arg5[%c0_15, %c0_16] : memref<128x128xf32, #tpu.memory_space<vmem>>, vector<128x128xf32>
      %cst_17 = arith.constant dense<0.000000e+00> : vector<128x128xf32>
      %19 = tpu.matmul %17, %18, %cst_17 {dimension_numbers = #tpu.dot_dimension_numbers<[1], [0], [0], [1], [0, 0, 1, 1], [], []>} : vector<128x128xf32>, vector<128x128xf32>, vector<128x128xf32> -> vector<128x128xf32>
      %c0_18 = arith.constant 0 : index
      %c0_19 = arith.constant 0 : index
      %20 = vector.load %arg6[%c0_18, %c0_19] : memref<128x128xf32, #tpu.memory_space<vmem>>, vector<128x128xf32>
      tpu.vector_store %arg6[%c0_18, %c0_19], %19 {strides = array<i32>} : memref<128x128xf32, #tpu.memory_space<vmem>>, vector<128x128xf32>,
    } else {
    }
    return
  }
  func.func @transform_0(%arg0: i32, %arg1: i32) -> (i32, i32) {
    %c0_i32 = arith.constant 0 : i32
    return %arg0, %arg1 : i32, i32
  }
  func.func @transform_1(%arg0: i32, %arg1: i32) -> (i32, i32) {
    %c0_i32 = arith.constant 0 : i32
    %c0_i32_0 = arith.constant 0 : i32
    return %arg1, %c0_i32 : i32, i32
  }
  func.func @transform_2(%arg0: i32, %arg1: i32) -> (i32, i32) {
    %c0_i32 = arith.constant 0 : i32
    %c0_i32_0 = arith.constant 0 : i32
    %c0_i32_1 = arith.constant 0 : i32
    return %c0_i32, %c0_i32_0 : i32, i32
  }
  func.func @transform_3(%arg0: i32, %arg1: i32) -> (i32, i32) {
    %c0_i32 = arith.constant 0 : i32
    %c0_i32_0 = arith.constant 0 : i32
    %c0_i32_1 = arith.constant 0 : i32
    return %c0_i32, %c0_i32_0 : i32, i32
  }
  func.func @transform_4(%arg0: i32, %arg1: i32) -> (i32, i32) {
    %c0_i32 = arith.constant 0 : i32
    %c0_i32_0 = arith.constant 0 : i32
    return %arg0, %c0_i32 : i32, i32
  }
}

module attributes {stable_mosaic.version = 11 : i64} {
  func.func @_transform_kernel(%arg0: i32, %arg1: memref<128x128xf32, #tpu.memory_space<vmem>>, %arg2: memref<128x128xf32, #tpu.memory_space<vmem>>, %arg3: memref<128x128xf32, #tpu.memory_space<vmem>>) attributes {dimension_semantics = [#tpu.dimension_semantics<parallel>], iteration_bounds = array<i64: 1>, scalar_prefetch = 0 : i64, scratch_operands = 0 : i64, tpu.core_type = #tpu.core_type<tc>, window_params = [{transform_indices = @transform_0, window_bounds = array<i64: 128, 128>}, {pipeline_mode = #tpu.pipeline_mode<synchronous>, transform_indices = @transform_1, window_bounds = array<i64: 128, 128>}, {transform_indices = @transform_2, window_bounds = array<i64: 128, 128>}]} {
    %c0 = arith.constant 0 : index
    %c0_0 = arith.constant 0 : index
    %0 = vector.load %arg1[%c0, %c0_0] : memref<128x128xf32, #tpu.memory_space<vmem>>, vector<128x128xf32>
    %c0_1 = arith.constant 0 : index
    %c0_2 = arith.constant 0 : index
    %1 = vector.load %arg2[%c0_1, %c0_2] : memref<128x128xf32, #tpu.memory_space<vmem>>, vector<128x128xf32>
    %cst = arith.constant dense<0.000000e+00> : vector<128x128xf32>
    %2 = tpu.matmul %0, %1, %cst {dimension_numbers = #tpu.dot_dimension_numbers<[1], [0], [0], [1], [0, 0, 1, 1], [], []>} : vector<128x128xf32>, vector<128x128xf32>, vector<128x128xf32> -> vector<128x128xf32>
    %c0_3 = arith.constant 0 : index
    %c0_4 = arith.constant 0 : index
    %3 = vector.load %arg3[%c0_3, %c0_4] : memref<128x128xf32, #tpu.memory_space<vmem>>, vector<128x128xf32>
    tpu.vector_store %arg3[%c0_3, %c0_4], %2 {strides = array<i32>} : memref<128x128xf32, #tpu.memory_space<vmem>>, vector<128x128xf32>,
    return
  }
  func.func @transform_0(%arg0: i32) -> (i32, i32) {
    %c0_i32 = arith.constant 0 : i32
    %c0_i32_0 = arith.constant 0 : i32
    return %arg0, %c0_i32 : i32, i32
  }
  func.func @transform_1(%arg0: i32) -> (i32, i32) {
    %c0_i32 = arith.constant 0 : i32
    %c0_i32_0 = arith.constant 0 : i32
    %c0_i32_1 = arith.constant 0 : i32
    return %c0_i32, %c0_i32_0 : i32, i32
  }
  func.func @transform_2(%arg0: i32) -> (i32, i32) {
    %c0_i32 = arith.constant 0 : i32
    %c0_i32_0 = arith.constant 0 : i32
    return %arg0, %c0_i32 : i32, i32
  }
}

module attributes {stable_mosaic.version = 11 : i64} {
  func.func @_agg_logsoftmax_kernel(%arg0: i32, %arg1: i32, %arg2: memref<128x128xf32, #tpu.memory_space<vmem>>, %arg3: memref<128x128xf32, #tpu.memory_space<vmem>>, %arg4: memref<1x128xf32, #tpu.memory_space<vmem>>, %arg5: memref<128x128xf32, #tpu.memory_space<vmem>>) attributes {dimension_semantics = [#tpu.dimension_semantics<parallel>, #tpu.dimension_semantics<arbitrary>], iteration_bounds = array<i64: 1, 1>, scalar_prefetch = 0 : i64, scratch_operands = 0 : i64, tpu.core_type = #tpu.core_type<tc>, window_params = [{transform_indices = @transform_0, window_bounds = array<i64: 128, 128>}, {transform_indices = @transform_1, window_bounds = array<i64: 128, 128>}, {pipeline_mode = #tpu.pipeline_mode<synchronous>, transform_indices = @transform_2, window_bounds = array<i64: 1, 128>}, {transform_indices = @transform_3, window_bounds = array<i64: 128, 128>}]} {
    %c0_i32 = arith.constant 0 : i32
    %0 = arith.cmpi eq, %arg1, %c0_i32 : i32
    %1 = arith.extui %0 : i1 to i32
    %c0_i32_0 = arith.constant 0 : i32
    %2 = arith.cmpi ne, %1, %c0_i32_0 : i32
    scf.if %2 {
      %cst_10 = arith.constant 0.000000e+00 : f32
      %12 = vector.broadcast %cst_10 : f32 to vector<128x128xf32>
      %c0_11 = arith.constant 0 : index
      %c0_12 = arith.constant 0 : index
      %13 = vector.load %arg5[%c0_11, %c0_12] : memref<128x128xf32, #tpu.memory_space<vmem>>, vector<128x128xf32>
      tpu.vector_store %arg5[%c0_11, %c0_12], %12 {strides = array<i32>} : memref<128x128xf32, #tpu.memory_space<vmem>>, vector<128x128xf32>,
    } else {
    }
    %c0 = arith.constant 0 : index
    %c0_1 = arith.constant 0 : index
    %3 = vector.load %arg5[%c0, %c0_1] : memref<128x128xf32, #tpu.memory_space<vmem>>, vector<128x128xf32>
    %c0_2 = arith.constant 0 : index
    %c0_3 = arith.constant 0 : index
    %4 = vector.load %arg2[%c0_2, %c0_3] : memref<128x128xf32, #tpu.memory_space<vmem>>, vector<128x128xf32>
    %c0_4 = arith.constant 0 : index
    %c0_5 = arith.constant 0 : index
    %5 = vector.load %arg3[%c0_4, %c0_5] : memref<128x128xf32, #tpu.memory_space<vmem>>, vector<128x128xf32>
    %cst = arith.constant dense<0.000000e+00> : vector<128x128xf32>
    %6 = tpu.matmul %4, %5, %cst {dimension_numbers = #tpu.dot_dimension_numbers<[1], [0], [0], [1], [0, 0, 1, 1], [], []>} : vector<128x128xf32>, vector<128x128xf32>, vector<128x128xf32> -> vector<128x128xf32>
    %7 = arith.addf %3, %6 : vector<128x128xf32>
    %c0_6 = arith.constant 0 : index
    %c0_7 = arith.constant 0 : index
    %8 = vector.load %arg5[%c0_6, %c0_7] : memref<128x128xf32, #tpu.memory_space<vmem>>, vector<128x128xf32>
    tpu.vector_store %arg5[%c0_6, %c0_7], %7 {strides = array<i32>} : memref<128x128xf32, #tpu.memory_space<vmem>>, vector<128x128xf32>,
    %c0_i32_8 = arith.constant 0 : i32
    %9 = arith.cmpi eq, %arg1, %c0_i32_8 : i32
    %10 = arith.extui %9 : i1 to i32
    %c0_i32_9 = arith.constant 0 : i32
    %11 = arith.cmpi ne, %10, %c0_i32_9 : i32
    scf.if %11 {
      %c0_10 = arith.constant 0 : index
      %c0_11 = arith.constant 0 : index
      %12 = vector.load %arg5[%c0_10, %c0_11] : memref<128x128xf32, #tpu.memory_space<vmem>>, vector<128x128xf32>
      %c0_12 = arith.constant 0 : index
      %c0_13 = arith.constant 0 : index
      %13 = vector.load %arg4[%c0_12, %c0_13] : memref<1x128xf32, #tpu.memory_space<vmem>>, vector<1x128xf32>
      %14 = vector.broadcast %13 : vector<1x128xf32> to vector<128x128xf32>
      %15 = arith.addf %12, %14 : vector<128x128xf32>
      %16 = tpu.iota {dimensions = array<i32: 1>} : vector<128x128xi32>
      %c4_i32 = arith.constant 4 : i32
      %17 = vector.broadcast %c4_i32 : i32 to vector<128x128xi32>
      %18 = arith.cmpi slt, %16, %17 : vector<128x128xi32>
      %cst_14 = arith.constant 0xFF800000 : f32
      %19 = vector.broadcast %cst_14 : f32 to vector<128x128xf32>
      %20 = arith.select %18, %15, %19 : vector<128x128xi1>, vector<128x128xf32>
      %cst_15 = arith.constant dense<0xFF800000> : vector<128xf32>
      %21 = vector.multi_reduction <maximumf>, %20, %cst_15 [1] : vector<128x128xf32> to vector<128xf32>
      %22 = vector.shape_cast %21 : vector<128xf32> to vector<128x1xf32>
      %23 = vector.broadcast %22 : vector<128x1xf32> to vector<128x128xf32>
      %24 = arith.subf %20, %23 : vector<128x128xf32>
      %25 = math.exp %24 : vector<128x128xf32>
      %cst_16 = arith.constant dense<0.000000e+00> : vector<128xf32>
      %26 = vector.multi_reduction <add>, %25, %cst_16 [1] : vector<128x128xf32> to vector<128xf32>
      %27 = vector.shape_cast %26 : vector<128xf32> to vector<128x1xf32>
      %28 = math.log %27 : vector<128x1xf32>
      %29 = vector.broadcast %28 : vector<128x1xf32> to vector<128x128xf32>
      %30 = arith.subf %24, %29 : vector<128x128xf32>
      %c0_17 = arith.constant 0 : index
      %c0_18 = arith.constant 0 : index
      %31 = vector.load %arg5[%c0_17, %c0_18] : memref<128x128xf32, #tpu.memory_space<vmem>>, vector<128x128xf32>
      tpu.vector_store %arg5[%c0_17, %c0_18], %30 {strides = array<i32>} : memref<128x128xf32, #tpu.memory_space<vmem>>, vector<128x128xf32>,
    } else {
    }
    return
  }
  func.func @transform_0(%arg0: i32, %arg1: i32) -> (i32, i32) {
    %c0_i32 = arith.constant 0 : i32
    return %arg0, %arg1 : i32, i32
  }
  func.func @transform_1(%arg0: i32, %arg1: i32) -> (i32, i32) {
    %c0_i32 = arith.constant 0 : i32
    %c0_i32_0 = arith.constant 0 : i32
    return %arg1, %c0_i32 : i32, i32
  }
  func.func @transform_2(%arg0: i32, %arg1: i32) -> (i32, i32) {
    %c0_i32 = arith.constant 0 : i32
    %c0_i32_0 = arith.constant 0 : i32
    %c0_i32_1 = arith.constant 0 : i32
    return %c0_i32, %c0_i32_0 : i32, i32
  }
  func.func @transform_3(%arg0: i32, %arg1: i32) -> (i32, i32) {
    %c0_i32 = arith.constant 0 : i32
    %c0_i32_0 = arith.constant 0 : i32
    return %arg0, %c0_i32 : i32, i32
  }
}

</mosaic_0001>

<llo_original>
// kernel: gcn_forward_padded.3
$region0: #{gcn_forward_padded.3}
  #allocation0 [shape = 'u32[]', space=smem, size = 0x4, offset = 0x4, fixed_abs, tag = 'smem constant byte address 0x4 - core index']
  #allocation1 [shape = 'u32[144,128]{1,0:T(1,128)}', space=vmem, size = 0x12000, scoped, tag = 'internal scratch']
  %s0 = inlined_call_operand.hbm [shape: f32[128,128], index: 0, kind: input, shape index: {}]
  %s1 = inlined_call_operand.hbm [shape: f32[128,128], index: 1, kind: input, shape index: {}]
  %s2 = inlined_call_operand.vmem [shape: f32[128,128], index: 2, kind: output, shape index: {}]
  %s3 = sld [smem:[#allocation0]]
  $region26: #{gcn_forward_padded.3} parent=0
    _
  %s5 = ssub.s32 1, %s3
  %s6 = scalar_select 0, %s5, %s3
  $region1: #{gcn_forward_padded.3} parent=0
    #allocation2 [shape = 'u8[65536]{0}', space=vmem, size = 0x10000, scoped, tag = 'input window, operand 0, single buffered']
    #allocation3 [shape = 's32[1]{0}', space=sflag, size = 0x4, scoped, tag = 'scoped memory for gcn_forward_padded.3']
    #allocation4 [shape = 'u8[65536]{0}', space=vmem, size = 0x10000, scoped, tag = 'input window, operand 1, single buffered']
    #allocation5 [shape = 's32[1]{0}', space=sflag, size = 0x4, scoped, tag = 'scoped memory for gcn_forward_padded.3']
    %7 = vsyncpa [#allocation3], 0
    %8 = vsyncpa [#allocation5], 0
    // Predicated region
    $region2: #{gcn_forward_padded.3} parent=1 // pred_check
      _
    $region3: #{gcn_forward_padded.3} parent=1 // pred_check_branch
      %10 = sbr.rel (0) target = $region5
    $region4: #{gcn_forward_padded.3} parent=1 // pred_region
      %s12 = ssub.s32 2048, 2048
      %13 = vsyncadd [#allocation3], %s12
      %s14 = sshll.u32 [#allocation2], 4
      %s15 = int_to_ptr.vmem [resolvable:$true] %s14
      %20 = dma.hbm_to_vmem [thread:$0]  %s0, 2048, %s15, [#allocation3], 128, 128, 8
    $region5: #{gcn_forward_padded.3} parent=1 // pred_fallthru
      _
    // Predicated region
    $region6: #{gcn_forward_padded.3} parent=1 // pred_check
      _
    $region7: #{gcn_forward_padded.3} parent=1 // pred_check_branch
      %22 = sbr.rel (0) target = $region9
    $region8: #{gcn_forward_padded.3} parent=1 // pred_region
      %s24 = ssub.s32 2048, 2048
      %25 = vsyncadd [#allocation5], %s24
      %s26 = sshll.u32 [#allocation4], 4
      %s27 = int_to_ptr.vmem [resolvable:$true] %s26
      %32 = dma.hbm_to_vmem [thread:$0]  %s1, 2048, %s27, [#allocation5], 128, 128, 8
    $region9: #{gcn_forward_padded.3} parent=1 // pred_fallthru
      _
    // Predicated region
    $region10: #{gcn_forward_padded.3} parent=1 // pred_check
      _
    $region11: #{gcn_forward_padded.3} parent=1 // pred_check_branch
      %34 = sbr.rel (0) target = $region13
    $region12: #{gcn_forward_padded.3} parent=1 // pred_region
      %35 = dma.done [#allocation3], 2048
    $region13: #{gcn_forward_padded.3} parent=1 // pred_fallthru
      _
    // Predicated region
    $region14: #{gcn_forward_padded.3} parent=1 // pred_check
      _
    $region15: #{gcn_forward_padded.3} parent=1 // pred_check_branch
      %37 = sbr.rel (0) target = $region17
    $region16: #{gcn_forward_padded.3} parent=1 // pred_region
      %38 = dma.done [#allocation5], 2048
    $region17: #{gcn_forward_padded.3} parent=1 // pred_fallthru
      _
    %v39 = vld [vmem:[#allocation2] sm:$0xff]
    %v40 = vld [vmem:[#allocation2 + $0x8] sm:$0xff]
    %v41 = vld [vmem:[#allocation2 + $0x10] sm:$0xff]
    %v42 = vld [vmem:[#allocation2 + $0x18] sm:$0xff]
    %v43 = vld [vmem:[#allocation2 + $0x20] sm:$0xff]
    %v44 = vld [vmem:[#allocation2 + $0x28] sm:$0xff]
    %v45 = vld [vmem:[#allocation2 + $0x30] sm:$0xff]
    %v46 = vld [vmem:[#allocation2 + $0x38] sm:$0xff]
    %v47 = vld [vmem:[#allocation2 + $0x40] sm:$0xff]
    %v48 = vld [vmem:[#allocation2 + $0x48] sm:$0xff]
    %v49 = vld [vmem:[#allocation2 + $0x50] sm:$0xff]
    %v50 = vld [vmem:[#allocation2 + $0x58] sm:$0xff]
    %v51 = vld [vmem:[#allocation2 + $0x60] sm:$0xff]
    %v52 = vld [vmem:[#allocation2 + $0x68] sm:$0xff]
    %v53 = vld [vmem:[#allocation2 + $0x70] sm:$0xff]
    %v54 = vld [vmem:[#allocation2 + $0x78] sm:$0xff]
    %v55 = vld [vmem:[#allocation4] sm:$0xff]
    %v56 = vld [vmem:[#allocation4 + $0x8] sm:$0xff]
    %v57 = vld [vmem:[#allocation4 + $0x10] sm:$0xff]
    %v58 = vld [vmem:[#allocation4 + $0x18] sm:$0xff]
    %v59 = vld [vmem:[#allocation4 + $0x20] sm:$0xff]
    %v60 = vld [vmem:[#allocation4 + $0x28] sm:$0xff]
    %v61 = vld [vmem:[#allocation4 + $0x30] sm:$0xff]
    %v62 = vld [vmem:[#allocation4 + $0x38] sm:$0xff]
    %v63 = vld [vmem:[#allocation4 + $0x40] sm:$0xff]
    %v64 = vld [vmem:[#allocation4 + $0x48] sm:$0xff]
    %v65 = vld [vmem:[#allocation4 + $0x50] sm:$0xff]
    %v66 = vld [vmem:[#allocation4 + $0x58] sm:$0xff]
    %v67 = vld [vmem:[#allocation4 + $0x60] sm:$0xff]
    %v68 = vld [vmem:[#allocation4 + $0x68] sm:$0xff]
    %v69 = vld [vmem:[#allocation4 + $0x70] sm:$0xff]
    %v70 = vld [vmem:[#allocation4 + $0x78] sm:$0xff]
    %71 = vmatprep.subr.mxu0 0.0
    %72 = vmatpush1.msra.mxu0 %v55
    %73 = vmatprep.subr.mxu0 0.0
    %74 = vmatpush1.msra.mxu0 %v56
    %75 = vmatprep.subr.mxu0 0.0
    %76 = vmatpush1.msra.mxu0 %v57
    %77 = vmatprep.subr.mxu0 0.0
    %78 = vmatpush1.msra.mxu0 %v58
    %79 = vmatprep.subr.mxu0 0.0
    %80 = vmatpush1.msra.mxu0 %v59
    %81 = vmatprep.subr.mxu0 0.0
    %82 = vmatpush1.msra.mxu0 %v60
    %83 = vmatprep.subr.mxu0 0.0
    %84 = vmatpush1.msra.mxu0 %v61
    %85 = vmatprep.subr.mxu0 0.0
    %86 = vmatpush1.msra.mxu0 %v62
    %87 = vmatprep.subr.mxu0 0.0
    %88 = vmatpush1.msra.mxu0 %v63
    %89 = vmatprep.subr.mxu0 0.0
    %90 = vmatpush1.msra.mxu0 %v64
    %91 = vmatprep.subr.mxu0 0.0
    %92 = vmatpush1.msra.mxu0 %v65
    %93 = vmatprep.subr.mxu0 0.0
    %94 = vmatpush1.msra.mxu0 %v66
    %95 = vmatprep.subr.mxu0 0.0
    %96 = vmatpush1.msra.mxu0 %v67
    %97 = vmatprep.subr.mxu0 0.0
    %98 = vmatpush1.msra.mxu0 %v68
    %99 = vmatprep.subr.mxu0 0.0
    %100 = vmatpush1.msra.mxu0 %v69
    %101 = vmatprep.subr.mxu0 0.0
    %102 = vmatpush1.msra.mxu0 %v70
    %103 = vmatprep.subr.mxu0 0.0
    %104 = vmatpush1.msra.mxu0 0.0
    %105 = vmatprep.subr.mxu0 0.0
    %106 = vmatpush1.msra.mxu0 0.0
    %107 = vmatprep.subr.mxu0 0.0
    %108 = vmatpush1.msra.mxu0 0.0
    %109 = vmatprep.subr.mxu0 0.0
    %110 = vmatpush1.msra.mxu0 0.0
    %111 = vmatprep.subr.mxu0 0.0
    %112 = vmatpush1.msra.mxu0 0.0
    %113 = vmatprep.subr.mxu0 0.0
    %114 = vmatpush1.msra.mxu0 0.0
    %115 = vmatprep.subr.mxu0 0.0
    %116 = vmatpush1.msra.mxu0 0.0
    %117 = vmatprep.subr.mxu0 0.0
    %118 = vmatpush1.msra.mxu0 0.0
    %119 = vmatprep.subr.mxu0 0.0
    %120 = vmatpush1.msra.mxu0 0.0
    %121 = vmatprep.subr.mxu0 0.0
    %122 = vmatpush1.msra.mxu0 0.0
    %123 = vmatprep.subr.mxu0 0.0
    %124 = vmatpush1.msra.mxu0 0.0
    %125 = vmatprep.subr.mxu0 0.0
    %126 = vmatpush1.msra.mxu0 0.0
    %127 = vmatprep.subr.mxu0 0.0
    %128 = vmatpush1.msra.mxu0 0.0
    %129 = vmatprep.subr.mxu0 0.0
    %130 = vmatpush1.msra.mxu0 0.0
    %131 = vmatprep.subr.mxu0 0.0
    %132 = vmatpush1.msra.mxu0 0.0
    %133 = vmatprep.subr.mxu0 0.0
    %134 = vmatpush1.msra.mxu0 0.0
    %135 = vmatprep.mubr.f32.mxu0 0.0
    %136 = vmatmul.mubr.f32.gmra.mrb[0].mxu0 %v39
    %v137 = vpop.f32.mrb[0].mxu0
    %v138 = vadd.f32 0.0, %v137
    %v139 = vpop.f32.mrb[0].mxu0
    %140 = vmatprep.mubr.f32.mxu0 0.0
    %141 = vmatmul.mubr.f32.gmra.mrb[0].mxu0 %v40
    %v142 = vpop.f32.mrb[0].mxu0
    %v143 = vadd.f32 0.0, %v142
    %v144 = vpop.f32.mrb[0].mxu0
    %145 = vmatprep.mubr.f32.mxu0 0.0
    %146 = vmatmul.mubr.f32.gmra.mrb[0].mxu0 %v41
    %v147 = vpop.f32.mrb[0].mxu0
    %v148 = vadd.f32 0.0, %v147
    %v149 = vpop.f32.mrb[0].mxu0
    %150 = vmatprep.mubr.f32.mxu0 0.0
    %151 = vmatmul.mubr.f32.gmra.mrb[0].mxu0 %v42
    %v152 = vpop.f32.mrb[0].mxu0
    %v153 = vadd.f32 0.0, %v152
    %v154 = vpop.f32.mrb[0].mxu0
    %155 = vmatprep.mubr.f32.mxu0 0.0
    %156 = vmatmul.mubr.f32.gmra.mrb[0].mxu0 %v43
    %v157 = vpop.f32.mrb[0].mxu0
    %v158 = vadd.f32 0.0, %v157
    %v159 = vpop.f32.mrb[0].mxu0
    %160 = vmatprep.mubr.f32.mxu0 0.0
    %161 = vmatmul.mubr.f32.gmra.mrb[0].mxu0 %v44
    %v162 = vpop.f32.mrb[0].mxu0
    %v163 = vadd.f32 0.0, %v162
    %v164 = vpop.f32.mrb[0].mxu0
    %165 = vmatprep.mubr.f32.mxu0 0.0
    %166 = vmatmul.mubr.f32.gmra.mrb[0].mxu0 %v45
    %v167 = vpop.f32.mrb[0].mxu0
    %v168 = vadd.f32 0.0, %v167
    %v169 = vpop.f32.mrb[0].mxu0
    %170 = vmatprep.mubr.f32.mxu0 0.0
    %171 = vmatmul.mubr.f32.gmra.mrb[0].mxu0 %v46
    %v172 = vpop.f32.mrb[0].mxu0
    %v173 = vadd.f32 0.0, %v172
    %v174 = vpop.f32.mrb[0].mxu0
    %175 = vmatprep.mubr.f32.mxu0 0.0
    %176 = vmatmul.mubr.f32.gmra.mrb[0].mxu0 %v47
    %v177 = vpop.f32.mrb[0].mxu0
    %v178 = vadd.f32 0.0, %v177
    %v179 = vpop.f32.mrb[0].mxu0
    %180 = vmatprep.mubr.f32.mxu0 0.0
    %181 = vmatmul.mubr.f32.gmra.mrb[0].mxu0 %v48
    %v182 = vpop.f32.mrb[0].mxu0
    %v183 = vadd.f32 0.0, %v182
    %v184 = vpop.f32.mrb[0].mxu0
    %185 = vmatprep.mubr.f32.mxu0 0.0
    %186 = vmatmul.mubr.f32.gmra.mrb[0].mxu0 %v49
    %v187 = vpop.f32.mrb[0].mxu0
    %v188 = vadd.f32 0.0, %v187
    %v189 = vpop.f32.mrb[0].mxu0
    %190 = vmatprep.mubr.f32.mxu0 0.0
    %191 = vmatmul.mubr.f32.gmra.mrb[0].mxu0 %v50
    %v192 = vpop.f32.mrb[0].mxu0
    %v193 = vadd.f32 0.0, %v192
    %v194 = vpop.f32.mrb[0].mxu0
    %195 = vmatprep.mubr.f32.mxu0 0.0
    %196 = vmatmul.mubr.f32.gmra.mrb[0].mxu0 %v51
    %v197 = vpop.f32.mrb[0].mxu0
    %v198 = vadd.f32 0.0, %v197
    %v199 = vpop.f32.mrb[0].mxu0
    %200 = vmatprep.mubr.f32.mxu0 0.0
    %201 = vmatmul.mubr.f32.gmra.mrb[0].mxu0 %v52
    %v202 = vpop.f32.mrb[0].mxu0
    %v203 = vadd.f32 0.0, %v202
    %v204 = vpop.f32.mrb[0].mxu0
    %205 = vmatprep.mubr.f32.mxu0 0.0
    %206 = vmatmul.mubr.f32.gmra.mrb[0].mxu0 %v53
    %v207 = vpop.f32.mrb[0].mxu0
    %v208 = vadd.f32 0.0, %v207
    %v209 = vpop.f32.mrb[0].mxu0
    %210 = vmatprep.mubr.f32.mxu0 0.0
    %211 = vmatmul.mubr.f32.gmra.mrb[0].mxu0 %v54
    %v212 = vpop.f32.mrb[0].mxu0
    %v213 = vadd.f32 0.0, %v212
    %v214 = vpop.f32.mrb[0].mxu0
    %215 = vdwg.mxu0
    %216 = vst [vmem:[%s2] sm:$0xff] %v138
    %217 = vst [vmem:[%s2 + $0x8] sm:$0xff] %v143
    %218 = vst [vmem:[%s2 + $0x10] sm:$0xff] %v148
    %219 = vst [vmem:[%s2 + $0x18] sm:$0xff] %v153
    %220 = vst [vmem:[%s2 + $0x20] sm:$0xff] %v158
    %221 = vst [vmem:[%s2 + $0x28] sm:$0xff] %v163
    %222 = vst [vmem:[%s2 + $0x30] sm:$0xff] %v168
    %223 = vst [vmem:[%s2 + $0x38] sm:$0xff] %v173
    %224 = vst [vmem:[%s2 + $0x40] sm:$0xff] %v178
    %225 = vst [vmem:[%s2 + $0x48] sm:$0xff] %v183
    %226 = vst [vmem:[%s2 + $0x50] sm:$0xff] %v188
    %227 = vst [vmem:[%s2 + $0x58] sm:$0xff] %v193
    %228 = vst [vmem:[%s2 + $0x60] sm:$0xff] %v198
    %229 = vst [vmem:[%s2 + $0x68] sm:$0xff] %v203
    %230 = vst [vmem:[%s2 + $0x70] sm:$0xff] %v208
    %231 = vst [vmem:[%s2 + $0x78] sm:$0xff] %v213
    // Predicated region
    $region18: #{gcn_forward_padded.3} parent=1 // pred_check
      _
    $region19: #{gcn_forward_padded.3} parent=1 // pred_check_branch
      %233 = sbr.rel (0) target = $region21
    $region20: #{gcn_forward_padded.3} parent=1 // pred_region
      _
    $region21: #{gcn_forward_padded.3} parent=1 // pred_fallthru
      _
    // Predicated region
    $region22: #{gcn_forward_padded.3} parent=1 // pred_check
      _
    $region23: #{gcn_forward_padded.3} parent=1 // pred_check_branch
      %235 = sbr.rel (0) target = $region25
    $region24: #{gcn_forward_padded.3} parent=1 // pred_region
      _
    $region25: #{gcn_forward_padded.3} parent=1 // pred_fallthru
      _
    %236 = vsyncpa [#allocation3], 1
    %237 = vsyncpa [#allocation5], 1

// kernel: gcn_forward_padded.5
$region0: #{gcn_forward_padded.5}
  #allocation0 [shape = 'u32[]', space=smem, size = 0x4, offset = 0x4, fixed_abs, tag = 'smem constant byte address 0x4 - core index']
  #allocation1 [shape = 'u32[144,128]{1,0:T(1,128)}', space=vmem, size = 0x12000, scoped, tag = 'internal scratch']
  %s0 = inlined_call_operand.vmem [shape: f32[128,128], index: 0, kind: input, shape index: {}]
  %s1 = inlined_call_operand.vmem [shape: f32[128,128], index: 1, kind: input, shape index: {}]
  %s2 = inlined_call_operand.vmem [shape: f32[1,128], index: 2, kind: input, shape index: {}]
  %s3 = inlined_call_operand.vmem [shape: f32[128,128], index: 3, kind: output, shape index: {}]
  %s4 = sld [smem:[#allocation0]]
  $region30: #{gcn_forward_padded.5} parent=0
    _
  %s6 = ssub.s32 1, %s4
  %s7 = scalar_select 0, %s6, %s4
  // Predicated region
  $region2: #{gcn_forward_padded.5} parent=0 // pred_check
    _
  $region3: #{gcn_forward_padded.5} parent=0 // pred_check_branch
    %9 = sbr.rel (0) target = $region5
  $region4: #{gcn_forward_padded.5} parent=0 // pred_region
    _
  $region5: #{gcn_forward_padded.5} parent=0 // pred_fallthru
    _
  // Predicated region
  $region6: #{gcn_forward_padded.5} parent=0 // pred_check
    _
  $region7: #{gcn_forward_padded.5} parent=0 // pred_check_branch
    %11 = sbr.rel (0) target = $region9
  $region8: #{gcn_forward_padded.5} parent=0 // pred_region
    _
  $region9: #{gcn_forward_padded.5} parent=0 // pred_fallthru
    _
  // Predicated region
  $region10: #{gcn_forward_padded.5} parent=0 // pred_check
    _
  $region11: #{gcn_forward_padded.5} parent=0 // pred_check_branch
    %13 = sbr.rel (0) target = $region13
  $region12: #{gcn_forward_padded.5} parent=0 // pred_region
    _
  $region13: #{gcn_forward_padded.5} parent=0 // pred_fallthru
    _
  %p14 = scmp.eq.s32.totalorder 0, 0
  // Predicated region
  $region14: #{gcn_forward_padded.5} parent=0 // pred_check
    %p15 = pneg %p14
  $region15: #{gcn_forward_padded.5} parent=0 // pred_check_branch
    %17 = sbr.rel (%p15) target = $region17
  $region16: #{gcn_forward_padded.5} parent=0 // pred_region
    %18 = vst [vmem:[%s3] sm:$0xff] 0.0
    %19 = vst [vmem:[%s3 + $0x8] sm:$0xff] 0.0
    %20 = vst [vmem:[%s3 + $0x10] sm:$0xff] 0.0
    %21 = vst [vmem:[%s3 + $0x18] sm:$0xff] 0.0
    %22 = vst [vmem:[%s3 + $0x20] sm:$0xff] 0.0
    %23 = vst [vmem:[%s3 + $0x28] sm:$0xff] 0.0
    %24 = vst [vmem:[%s3 + $0x30] sm:$0xff] 0.0
    %25 = vst [vmem:[%s3 + $0x38] sm:$0xff] 0.0
    %26 = vst [vmem:[%s3 + $0x40] sm:$0xff] 0.0
    %27 = vst [vmem:[%s3 + $0x48] sm:$0xff] 0.0
    %28 = vst [vmem:[%s3 + $0x50] sm:$0xff] 0.0
    %29 = vst [vmem:[%s3 + $0x58] sm:$0xff] 0.0
    %30 = vst [vmem:[%s3 + $0x60] sm:$0xff] 0.0
    %31 = vst [vmem:[%s3 + $0x68] sm:$0xff] 0.0
    %32 = vst [vmem:[%s3 + $0x70] sm:$0xff] 0.0
    %33 = vst [vmem:[%s3 + $0x78] sm:$0xff] 0.0
  $region17: #{gcn_forward_padded.5} parent=0 // pred_fallthru
    _
  %v34 = vld [vmem:[%s3] sm:$0xff]
  %v35 = vld [vmem:[%s3 + $0x8] sm:$0xff]
  %v36 = vld [vmem:[%s3 + $0x10] sm:$0xff]
  %v37 = vld [vmem:[%s3 + $0x18] sm:$0xff]
  %v38 = vld [vmem:[%s3 + $0x20] sm:$0xff]
  %v39 = vld [vmem:[%s3 + $0x28] sm:$0xff]
  %v40 = vld [vmem:[%s3 + $0x30] sm:$0xff]
  %v41 = vld [vmem:[%s3 + $0x38] sm:$0xff]
  %v42 = vld [vmem:[%s3 + $0x40] sm:$0xff]
  %v43 = vld [vmem:[%s3 + $0x48] sm:$0xff]
  %v44 = vld [vmem:[%s3 + $0x50] sm:$0xff]
  %v45 = vld [vmem:[%s3 + $0x58] sm:$0xff]
  %v46 = vld [vmem:[%s3 + $0x60] sm:$0xff]
  %v47 = vld [vmem:[%s3 + $0x68] sm:$0xff]
  %v48 = vld [vmem:[%s3 + $0x70] sm:$0xff]
  %v49 = vld [vmem:[%s3 + $0x78] sm:$0xff]
  %v50 = vld [vmem:[%s0] sm:$0xff]
  %v51 = vld [vmem:[%s0 + $0x8] sm:$0xff]
  %v52 = vld [vmem:[%s0 + $0x10] sm:$0xff]
  %v53 = vld [vmem:[%s0 + $0x18] sm:$0xff]
  %v54 = vld [vmem:[%s0 + $0x20] sm:$0xff]
  %v55 = vld [vmem:[%s0 + $0x28] sm:$0xff]
  %v56 = vld [vmem:[%s0 + $0x30] sm:$0xff]
  %v57 = vld [vmem:[%s0 + $0x38] sm:$0xff]
  %v58 = vld [vmem:[%s0 + $0x40] sm:$0xff]
  %v59 = vld [vmem:[%s0 + $0x48] sm:$0xff]
  %v60 = vld [vmem:[%s0 + $0x50] sm:$0xff]
  %v61 = vld [vmem:[%s0 + $0x58] sm:$0xff]
  %v62 = vld [vmem:[%s0 + $0x60] sm:$0xff]
  %v63 = vld [vmem:[%s0 + $0x68] sm:$0xff]
  %v64 = vld [vmem:[%s0 + $0x70] sm:$0xff]
  %v65 = vld [vmem:[%s0 + $0x78] sm:$0xff]
  %v66 = vld [vmem:[%s1] sm:$0xff]
  %v67 = vld [vmem:[%s1 + $0x8] sm:$0xff]
  %v68 = vld [vmem:[%s1 + $0x10] sm:$0xff]
  %v69 = vld [vmem:[%s1 + $0x18] sm:$0xff]
  %v70 = vld [vmem:[%s1 + $0x20] sm:$0xff]
  %v71 = vld [vmem:[%s1 + $0x28] sm:$0xff]
  %v72 = vld [vmem:[%s1 + $0x30] sm:$0xff]
  %v73 = vld [vmem:[%s1 + $0x38] sm:$0xff]
  %v74 = vld [vmem:[%s1 + $0x40] sm:$0xff]
  %v75 = vld [vmem:[%s1 + $0x48] sm:$0xff]
  %v76 = vld [vmem:[%s1 + $0x50] sm:$0xff]
  %v77 = vld [vmem:[%s1 + $0x58] sm:$0xff]
  %v78 = vld [vmem:[%s1 + $0x60] sm:$0xff]
  %v79 = vld [vmem:[%s1 + $0x68] sm:$0xff]
  %v80 = vld [vmem:[%s1 + $0x70] sm:$0xff]
  %v81 = vld [vmem:[%s1 + $0x78] sm:$0xff]
  %82 = vmatprep.subr.mxu0 0.0
  %83 = vmatpush1.msra.mxu0 %v66
  %84 = vmatprep.subr.mxu0 0.0
  %85 = vmatpush1.msra.mxu0 %v67
  %86 = vmatprep.subr.mxu0 0.0
  %87 = vmatpush1.msra.mxu0 %v68
  %88 = vmatprep.subr.mxu0 0.0
  %89 = vmatpush1.msra.mxu0 %v69
  %90 = vmatprep.subr.mxu0 0.0
  %91 = vmatpush1.msra.mxu0 %v70
  %92 = vmatprep.subr.mxu0 0.0
  %93 = vmatpush1.msra.mxu0 %v71
  %94 = vmatprep.subr.mxu0 0.0
  %95 = vmatpush1.msra.mxu0 %v72
  %96 = vmatprep.subr.mxu0 0.0
  %97 = vmatpush1.msra.mxu0 %v73
  %98 = vmatprep.subr.mxu0 0.0
  %99 = vmatpush1.msra.mxu0 %v74
  %100 = vmatprep.subr.mxu0 0.0
  %101 = vmatpush1.msra.mxu0 %v75
  %102 = vmatprep.subr.mxu0 0.0
  %103 = vmatpush1.msra.mxu0 %v76
  %104 = vmatprep.subr.mxu0 0.0
  %105 = vmatpush1.msra.mxu0 %v77
  %106 = vmatprep.subr.mxu0 0.0
  %107 = vmatpush1.msra.mxu0 %v78
  %108 = vmatprep.subr.mxu0 0.0
  %109 = vmatpush1.msra.mxu0 %v79
  %110 = vmatprep.subr.mxu0 0.0
  %111 = vmatpush1.msra.mxu0 %v80
  %112 = vmatprep.subr.mxu0 0.0
  %113 = vmatpush1.msra.mxu0 %v81
  %114 = vmatprep.subr.mxu0 0.0
  %115 = vmatpush1.msra.mxu0 0.0
  %116 = vmatprep.subr.mxu0 0.0
  %117 = vmatpush1.msra.mxu0 0.0
  %118 = vmatprep.subr.mxu0 0.0
  %119 = vmatpush1.msra.mxu0 0.0
  %120 = vmatprep.subr.mxu0 0.0
  %121 = vmatpush1.msra.mxu0 0.0
  %122 = vmatprep.subr.mxu0 0.0
  %123 = vmatpush1.msra.mxu0 0.0
  %124 = vmatprep.subr.mxu0 0.0
  %125 = vmatpush1.msra.mxu0 0.0
  %126 = vmatprep.subr.mxu0 0.0
  %127 = vmatpush1.msra.mxu0 0.0
  %128 = vmatprep.subr.mxu0 0.0
  %129 = vmatpush1.msra.mxu0 0.0
  %130 = vmatprep.subr.mxu0 0.0
  %131 = vmatpush1.msra.mxu0 0.0
  %132 = vmatprep.subr.mxu0 0.0
  %133 = vmatpush1.msra.mxu0 0.0
  %134 = vmatprep.subr.mxu0 0.0
  %135 = vmatpush1.msra.mxu0 0.0
  %136 = vmatprep.subr.mxu0 0.0
  %137 = vmatpush1.msra.mxu0 0.0
  %138 = vmatprep.subr.mxu0 0.0
  %139 = vmatpush1.msra.mxu0 0.0
  %140 = vmatprep.subr.mxu0 0.0
  %141 = vmatpush1.msra.mxu0 0.0
  %142 = vmatprep.subr.mxu0 0.0
  %143 = vmatpush1.msra.mxu0 0.0
  %144 = vmatprep.subr.mxu0 0.0
  %145 = vmatpush1.msra.mxu0 0.0
  %146 = vmatprep.mubr.f32.mxu0 0.0
  %147 = vmatmul.mubr.f32.gmra.mrb[0].mxu0 %v50
  %v148 = vpop.f32.mrb[0].mxu0
  %v149 = vadd.f32 0.0, %v148
  %v150 = vpop.f32.mrb[0].mxu0
  %151 = vmatprep.mubr.f32.mxu0 0.0
  %152 = vmatmul.mubr.f32.gmra.mrb[0].mxu0 %v51
  %v153 = vpop.f32.mrb[0].mxu0
  %v154 = vadd.f32 0.0, %v153
  %v155 = vpop.f32.mrb[0].mxu0
  %156 = vmatprep.mubr.f32.mxu0 0.0
  %157 = vmatmul.mubr.f32.gmra.mrb[0].mxu0 %v52
  %v158 = vpop.f32.mrb[0].mxu0
  %v159 = vadd.f32 0.0, %v158
  %v160 = vpop.f32.mrb[0].mxu0
  %161 = vmatprep.mubr.f32.mxu0 0.0
  %162 = vmatmul.mubr.f32.gmra.mrb[0].mxu0 %v53
  %v163 = vpop.f32.mrb[0].mxu0
  %v164 = vadd.f32 0.0, %v163
  %v165 = vpop.f32.mrb[0].mxu0
  %166 = vmatprep.mubr.f32.mxu0 0.0
  %167 = vmatmul.mubr.f32.gmra.mrb[0].mxu0 %v54
  %v168 = vpop.f32.mrb[0].mxu0
  %v169 = vadd.f32 0.0, %v168
  %v170 = vpop.f32.mrb[0].mxu0
  %171 = vmatprep.mubr.f32.mxu0 0.0
  %172 = vmatmul.mubr.f32.gmra.mrb[0].mxu0 %v55
  %v173 = vpop.f32.mrb[0].mxu0
  %v174 = vadd.f32 0.0, %v173
  %v175 = vpop.f32.mrb[0].mxu0
  %176 = vmatprep.mubr.f32.mxu0 0.0
  %177 = vmatmul.mubr.f32.gmra.mrb[0].mxu0 %v56
  %v178 = vpop.f32.mrb[0].mxu0
  %v179 = vadd.f32 0.0, %v178
  %v180 = vpop.f32.mrb[0].mxu0
  %181 = vmatprep.mubr.f32.mxu0 0.0
  %182 = vmatmul.mubr.f32.gmra.mrb[0].mxu0 %v57
  %v183 = vpop.f32.mrb[0].mxu0
  %v184 = vadd.f32 0.0, %v183
  %v185 = vpop.f32.mrb[0].mxu0
  %186 = vmatprep.mubr.f32.mxu0 0.0
  %187 = vmatmul.mubr.f32.gmra.mrb[0].mxu0 %v58
  %v188 = vpop.f32.mrb[0].mxu0
  %v189 = vadd.f32 0.0, %v188
  %v190 = vpop.f32.mrb[0].mxu0
  %191 = vmatprep.mubr.f32.mxu0 0.0
  %192 = vmatmul.mubr.f32.gmra.mrb[0].mxu0 %v59
  %v193 = vpop.f32.mrb[0].mxu0
  %v194 = vadd.f32 0.0, %v193
  %v195 = vpop.f32.mrb[0].mxu0
  %196 = vmatprep.mubr.f32.mxu0 0.0
  %197 = vmatmul.mubr.f32.gmra.mrb[0].mxu0 %v60
  %v198 = vpop.f32.mrb[0].mxu0
  %v199 = vadd.f32 0.0, %v198
  %v200 = vpop.f32.mrb[0].mxu0
  %201 = vmatprep.mubr.f32.mxu0 0.0
  %202 = vmatmul.mubr.f32.gmra.mrb[0].mxu0 %v61
  %v203 = vpop.f32.mrb[0].mxu0
  %v204 = vadd.f32 0.0, %v203
  %v205 = vpop.f32.mrb[0].mxu0
  %206 = vmatprep.mubr.f32.mxu0 0.0
  %207 = vmatmul.mubr.f32.gmra.mrb[0].mxu0 %v62
  %v208 = vpop.f32.mrb[0].mxu0
  %v209 = vadd.f32 0.0, %v208
  %v210 = vpop.f32.mrb[0].mxu0
  %211 = vmatprep.mubr.f32.mxu0 0.0
  %212 = vmatmul.mubr.f32.gmra.mrb[0].mxu0 %v63
  %v213 = vpop.f32.mrb[0].mxu0
  %v214 = vadd.f32 0.0, %v213
  %v215 = vpop.f32.mrb[0].mxu0
  %216 = vmatprep.mubr.f32.mxu0 0.0
  %217 = vmatmul.mubr.f32.gmra.mrb[0].mxu0 %v64
  %v218 = vpop.f32.mrb[0].mxu0
  %v219 = vadd.f32 0.0, %v218
  %v220 = vpop.f32.mrb[0].mxu0
  %221 = vmatprep.mubr.f32.mxu0 0.0
  %222 = vmatmul.mubr.f32.gmra.mrb[0].mxu0 %v65
  %v223 = vpop.f32.mrb[0].mxu0
  %v224 = vadd.f32 0.0, %v223
  %v225 = vpop.f32.mrb[0].mxu0
  %226 = vdwg.mxu0
  %v227 = vadd.f32 %v34, %v149
  %v228 = vadd.f32 %v35, %v154
  %v229 = vadd.f32 %v36, %v159
  %v230 = vadd.f32 %v37, %v164
  %v231 = vadd.f32 %v38, %v169
  %v232 = vadd.f32 %v39, %v174
  %v233 = vadd.f32 %v40, %v179
  %v234 = vadd.f32 %v41, %v184
  %v235 = vadd.f32 %v42, %v189
  %v236 = vadd.f32 %v43, %v194
  %v237 = vadd.f32 %v44, %v199
  %v238 = vadd.f32 %v45, %v204
  %v239 = vadd.f32 %v46, %v209
  %v240 = vadd.f32 %v47, %v214
  %v241 = vadd.f32 %v48, %v219
  %v242 = vadd.f32 %v49, %v224
  %243 = vst [vmem:[%s3] sm:$0xff] %v227
  %244 = vst [vmem:[%s3 + $0x8] sm:$0xff] %v228
  %245 = vst [vmem:[%s3 + $0x10] sm:$0xff] %v229
  %246 = vst [vmem:[%s3 + $0x18] sm:$0xff] %v230
  %247 = vst [vmem:[%s3 + $0x20] sm:$0xff] %v231
  %248 = vst [vmem:[%s3 + $0x28] sm:$0xff] %v232
  %249 = vst [vmem:[%s3 + $0x30] sm:$0xff] %v233
  %250 = vst [vmem:[%s3 + $0x38] sm:$0xff] %v234
  %251 = vst [vmem:[%s3 + $0x40] sm:$0xff] %v235
  %252 = vst [vmem:[%s3 + $0x48] sm:$0xff] %v236
  %253 = vst [vmem:[%s3 + $0x50] sm:$0xff] %v237
  %254 = vst [vmem:[%s3 + $0x58] sm:$0xff] %v238
  %255 = vst [vmem:[%s3 + $0x60] sm:$0xff] %v239
  %256 = vst [vmem:[%s3 + $0x68] sm:$0xff] %v240
  %257 = vst [vmem:[%s3 + $0x70] sm:$0xff] %v241
  %258 = vst [vmem:[%s3 + $0x78] sm:$0xff] %v242
  // Predicated region
  $region18: #{gcn_forward_padded.5} parent=0 // pred_check
    %p259 = pneg %p14
  $region19: #{gcn_forward_padded.5} parent=0 // pred_check_branch
    %261 = sbr.rel (%p259) target = $region21
  $region20: #{gcn_forward_padded.5} parent=0 // pred_region
    %v262 = vld [vmem:[%s3] sm:$0xff]
    %v263 = vld [vmem:[%s3 + $0x8] sm:$0xff]
    %v264 = vld [vmem:[%s3 + $0x10] sm:$0xff]
    %v265 = vld [vmem:[%s3 + $0x18] sm:$0xff]
    %v266 = vld [vmem:[%s3 + $0x20] sm:$0xff]
    %v267 = vld [vmem:[%s3 + $0x28] sm:$0xff]
    %v268 = vld [vmem:[%s3 + $0x30] sm:$0xff]
    %v269 = vld [vmem:[%s3 + $0x38] sm:$0xff]
    %v270 = vld [vmem:[%s3 + $0x40] sm:$0xff]
    %v271 = vld [vmem:[%s3 + $0x48] sm:$0xff]
    %v272 = vld [vmem:[%s3 + $0x50] sm:$0xff]
    %v273 = vld [vmem:[%s3 + $0x58] sm:$0xff]
    %v274 = vld [vmem:[%s3 + $0x60] sm:$0xff]
    %v275 = vld [vmem:[%s3 + $0x68] sm:$0xff]
    %v276 = vld [vmem:[%s3 + $0x70] sm:$0xff]
    %v277 = vld [vmem:[%s3 + $0x78] sm:$0xff]
    %v278 = vld [vmem:[%s2] sm:$0x1]
    %v280 = vlaneseq
    %v281 = vshrl.u32 %v280, 7
    %v282 = vsub.s32 0, %v281
    %v283 = vrot.slane %v278, %v282
    %v285 = vadd.f32 %v262, %v283
    %v286 = vadd.f32 %v263, %v283
    %v287 = vadd.f32 %v264, %v283
    %v288 = vadd.f32 %v265, %v283
    %v289 = vadd.f32 %v266, %v283
    %v290 = vadd.f32 %v267, %v283
    %v291 = vadd.f32 %v268, %v283
    %v292 = vadd.f32 %v269, %v283
    %v293 = vadd.f32 %v270, %v283
    %v294 = vadd.f32 %v271, %v283
    %v295 = vadd.f32 %v272, %v283
    %v296 = vadd.f32 %v273, %v283
    %v297 = vadd.f32 %v274, %v283
    %v298 = vadd.f32 %v275, %v283
    %v299 = vadd.f32 %v276, %v283
    %v300 = vadd.f32 %v277, %v283
    %v301 = vlaneseq
    %v302 = vand.u32 %v301, 127
    %vm303 = vcmp.lt.s32.totalorder %v302, 4
    %v304 = vsel %vm303, %v285, -inf
    %v305 = vsel %vm303, %v286, -inf
    %v306 = vsel %vm303, %v287, -inf
    %v307 = vsel %vm303, %v288, -inf
    %v308 = vsel %vm303, %v289, -inf
    %v309 = vsel %vm303, %v290, -inf
    %v310 = vsel %vm303, %v291, -inf
    %v311 = vsel %vm303, %v292, -inf
    %v312 = vsel %vm303, %v293, -inf
    %v313 = vsel %vm303, %v294, -inf
    %v314 = vsel %vm303, %v295, -inf
    %v315 = vsel %vm303, %v296, -inf
    %v316 = vsel %vm303, %v297, -inf
    %v317 = vsel %vm303, %v298, -inf
    %v318 = vsel %vm303, %v299, -inf
    %v319 = vsel %vm303, %v300, -inf
    %320 = vmax.xlane.f32.xlu0 %v304
    %v321 = vpop.xlane.xlu0 %320
    %322 = vmax.xlane.f32.xlu0 %v305
    %v323 = vpop.xlane.xlu0 %322
    %324 = vmax.xlane.f32.xlu0 %v306
    %v325 = vpop.xlane.xlu0 %324
    %326 = vmax.xlane.f32.xlu0 %v307
    %v327 = vpop.xlane.xlu0 %326
    %328 = vmax.xlane.f32.xlu0 %v308
    %v329 = vpop.xlane.xlu0 %328
    %330 = vmax.xlane.f32.xlu0 %v309
    %v331 = vpop.xlane.xlu0 %330
    %332 = vmax.xlane.f32.xlu0 %v310
    %v333 = vpop.xlane.xlu0 %332
    %334 = vmax.xlane.f32.xlu0 %v311
    %v335 = vpop.xlane.xlu0 %334
    %336 = vmax.xlane.f32.xlu0 %v312
    %v337 = vpop.xlane.xlu0 %336
    %338 = vmax.xlane.f32.xlu0 %v313
    %v339 = vpop.xlane.xlu0 %338
    %340 = vmax.xlane.f32.xlu0 %v314
    %v341 = vpop.xlane.xlu0 %340
    %342 = vmax.xlane.f32.xlu0 %v315
    %v343 = vpop.xlane.xlu0 %342
    %344 = vmax.xlane.f32.xlu0 %v316
    %v345 = vpop.xlane.xlu0 %344
    %346 = vmax.xlane.f32.xlu0 %v317
    %v347 = vpop.xlane.xlu0 %346
    %348 = vmax.xlane.f32.xlu0 %v318
    %v349 = vpop.xlane.xlu0 %348
    %350 = vmax.xlane.f32.xlu0 %v319
    %v351 = vpop.xlane.xlu0 %350
    %v352 = vsub.f32 %v304, %v321
    %v353 = vsub.f32 %v305, %v323
    %v354 = vsub.f32 %v306, %v325
    %v355 = vsub.f32 %v307, %v327
    %v356 = vsub.f32 %v308, %v329
    %v357 = vsub.f32 %v309, %v331
    %v358 = vsub.f32 %v310, %v333
    %v359 = vsub.f32 %v311, %v335
    %v360 = vsub.f32 %v312, %v337
    %v361 = vsub.f32 %v313, %v339
    %v362 = vsub.f32 %v314, %v341
    %v363 = vsub.f32 %v315, %v343
    %v364 = vsub.f32 %v316, %v345
    %v365 = vsub.f32 %v317, %v347
    %v366 = vsub.f32 %v318, %v349
    %v367 = vsub.f32 %v319, %v351
    %v368 = vmul.f32 %v352, 1.442695
    %v369 = vpow.pop %v368
    %v370 = vmul.f32 %v353, 1.442695
    %v371 = vpow.pop %v370
    %v372 = vmul.f32 %v354, 1.442695
    %v373 = vpow.pop %v372
    %v374 = vmul.f32 %v355, 1.442695
    %v375 = vpow.pop %v374
    %v376 = vmul.f32 %v356, 1.442695
    %v377 = vpow.pop %v376
    %v378 = vmul.f32 %v357, 1.442695
    %v379 = vpow.pop %v378
    %v380 = vmul.f32 %v358, 1.442695
    %v381 = vpow.pop %v380
    %v382 = vmul.f32 %v359, 1.442695
    %v383 = vpow.pop %v382
    %v384 = vmul.f32 %v360, 1.442695
    %v385 = vpow.pop %v384
    %v386 = vmul.f32 %v361, 1.442695
    %v387 = vpow.pop %v386
    %v388 = vmul.f32 %v362, 1.442695
    %v389 = vpow.pop %v388
    %v390 = vmul.f32 %v363, 1.442695
    %v391 = vpow.pop %v390
    %v392 = vmul.f32 %v364, 1.442695
    %v393 = vpow.pop %v392
    %v394 = vmul.f32 %v365, 1.442695
    %v395 = vpow.pop %v394
    %v396 = vmul.f32 %v366, 1.442695
    %v397 = vpow.pop %v396
    %v398 = vmul.f32 %v367, 1.442695
    %v399 = vpow.pop %v398
    %400 = vadd.xlane.f32.xlu0 %v369
    %v401 = vpop.xlane.xlu0 %400
    %402 = vadd.xlane.f32.xlu0 %v371
    %v403 = vpop.xlane.xlu0 %402
    %404 = vadd.xlane.f32.xlu0 %v373
    %v405 = vpop.xlane.xlu0 %404
    %406 = vadd.xlane.f32.xlu0 %v375
    %v407 = vpop.xlane.xlu0 %406
    %408 = vadd.xlane.f32.xlu0 %v377
    %v409 = vpop.xlane.xlu0 %408
    %410 = vadd.xlane.f32.xlu0 %v379
    %v411 = vpop.xlane.xlu0 %410
    %412 = vadd.xlane.f32.xlu0 %v381
    %v413 = vpop.xlane.xlu0 %412
    %414 = vadd.xlane.f32.xlu0 %v383
    %v415 = vpop.xlane.xlu0 %414
    %416 = vadd.xlane.f32.xlu0 %v385
    %v417 = vpop.xlane.xlu0 %416
    %418 = vadd.xlane.f32.xlu0 %v387
    %v419 = vpop.xlane.xlu0 %418
    %420 = vadd.xlane.f32.xlu0 %v389
    %v421 = vpop.xlane.xlu0 %420
    %422 = vadd.xlane.f32.xlu0 %v391
    %v423 = vpop.xlane.xlu0 %422
    %424 = vadd.xlane.f32.xlu0 %v393
    %v425 = vpop.xlane.xlu0 %424
    %426 = vadd.xlane.f32.xlu0 %v395
    %v427 = vpop.xlane.xlu0 %426
    %428 = vadd.xlane.f32.xlu0 %v397
    %v429 = vpop.xlane.xlu0 %428
    %430 = vadd.xlane.f32.xlu0 %v399
    %v431 = vpop.xlane.xlu0 %430
    %v432 = vlog2.pop %v401
    %v433 = vmul.f32 %v432, 0.6931472
    %v434 = vlog2.pop %v403
    %v435 = vmul.f32 %v434, 0.6931472
    %v436 = vlog2.pop %v405
    %v437 = vmul.f32 %v436, 0.6931472
    %v438 = vlog2.pop %v407
    %v439 = vmul.f32 %v438, 0.6931472
    %v440 = vlog2.pop %v409
    %v441 = vmul.f32 %v440, 0.6931472
    %v442 = vlog2.pop %v411
    %v443 = vmul.f32 %v442, 0.6931472
    %v444 = vlog2.pop %v413
    %v445 = vmul.f32 %v444, 0.6931472
    %v446 = vlog2.pop %v415
    %v447 = vmul.f32 %v446, 0.6931472
    %v448 = vlog2.pop %v417
    %v449 = vmul.f32 %v448, 0.6931472
    %v450 = vlog2.pop %v419
    %v451 = vmul.f32 %v450, 0.6931472
    %v452 = vlog2.pop %v421
    %v453 = vmul.f32 %v452, 0.6931472
    %v454 = vlog2.pop %v423
    %v455 = vmul.f32 %v454, 0.6931472
    %v456 = vlog2.pop %v425
    %v457 = vmul.f32 %v456, 0.6931472
    %v458 = vlog2.pop %v427
    %v459 = vmul.f32 %v458, 0.6931472
    %v460 = vlog2.pop %v429
    %v461 = vmul.f32 %v460, 0.6931472
    %v462 = vlog2.pop %v431
    %v463 = vmul.f32 %v462, 0.6931472
    %v464 = vsub.f32 %v352, %v433
    %v465 = vsub.f32 %v353, %v435
    %v466 = vsub.f32 %v354, %v437
    %v467 = vsub.f32 %v355, %v439
    %v468 = vsub.f32 %v356, %v441
    %v469 = vsub.f32 %v357, %v443
    %v470 = vsub.f32 %v358, %v445
    %v471 = vsub.f32 %v359, %v447
    %v472 = vsub.f32 %v360, %v449
    %v473 = vsub.f32 %v361, %v451
    %v474 = vsub.f32 %v362, %v453
    %v475 = vsub.f32 %v363, %v455
    %v476 = vsub.f32 %v364, %v457
    %v477 = vsub.f32 %v365, %v459
    %v478 = vsub.f32 %v366, %v461
    %v479 = vsub.f32 %v367, %v463
    %480 = vst [vmem:[%s3] sm:$0xff] %v464
    %481 = vst [vmem:[%s3 + $0x8] sm:$0xff] %v465
    %482 = vst [vmem:[%s3 + $0x10] sm:$0xff] %v466
    %483 = vst [vmem:[%s3 + $0x18] sm:$0xff] %v467
    %484 = vst [vmem:[%s3 + $0x20] sm:$0xff] %v468
    %485 = vst [vmem:[%s3 + $0x28] sm:$0xff] %v469
    %486 = vst [vmem:[%s3 + $0x30] sm:$0xff] %v470
    %487 = vst [vmem:[%s3 + $0x38] sm:$0xff] %v471
    %488 = vst [vmem:[%s3 + $0x40] sm:$0xff] %v472
    %489 = vst [vmem:[%s3 + $0x48] sm:$0xff] %v473
    %490 = vst [vmem:[%s3 + $0x50] sm:$0xff] %v474
    %491 = vst [vmem:[%s3 + $0x58] sm:$0xff] %v475
    %492 = vst [vmem:[%s3 + $0x60] sm:$0xff] %v476
    %493 = vst [vmem:[%s3 + $0x68] sm:$0xff] %v477
    %494 = vst [vmem:[%s3 + $0x70] sm:$0xff] %v478
    %495 = vst [vmem:[%s3 + $0x78] sm:$0xff] %v479
  $region21: #{gcn_forward_padded.5} parent=0 // pred_fallthru
    _
  // Predicated region
  $region22: #{gcn_forward_padded.5} parent=0 // pred_check
    _
  $region23: #{gcn_forward_padded.5} parent=0 // pred_check_branch
    %497 = sbr.rel (0) target = $region25
  $region24: #{gcn_forward_padded.5} parent=0 // pred_region
    _
  $region25: #{gcn_forward_padded.5} parent=0 // pred_fallthru
    _
  // Predicated region
  $region26: #{gcn_forward_padded.5} parent=0 // pred_check
    _
  $region27: #{gcn_forward_padded.5} parent=0 // pred_check_branch
    %499 = sbr.rel (0) target = $region29
  $region28: #{gcn_forward_padded.5} parent=0 // pred_region
    _
  $region29: #{gcn_forward_padded.5} parent=0 // pred_fallthru
    _

// kernel: gcn_forward_padded.4
$region0: #{gcn_forward_padded.4}
  #allocation0 [shape = 'u32[]', space=smem, size = 0x4, offset = 0x4, fixed_abs, tag = 'smem constant byte address 0x4 - core index']
  #allocation1 [shape = 'u32[144,128]{1,0:T(1,128)}', space=vmem, size = 0x12000, scoped, tag = 'internal scratch']
  #allocation2 [shape = 'f32[128,128]{1,0:T(8,128)}', space=vmem, size = 0x10000, scoped, tag = 'scratch operand']
  %s0 = inlined_call_operand.vmem [shape: f32[128,128], index: 0, kind: input, shape index: {}]
  %s1 = inlined_call_operand.vmem [shape: f32[128,128], index: 1, kind: input, shape index: {}]
  %s2 = inlined_call_operand.vmem [shape: f32[1,128], index: 2, kind: input, shape index: {}]
  %s3 = inlined_call_operand.vmem [shape: f32[128,128], index: 3, kind: input, shape index: {}]
  %s4 = inlined_call_operand.vmem [shape: f32[128,128], index: 4, kind: output, shape index: {}]
  %s5 = sld [smem:[#allocation0]]
  $region34: #{gcn_forward_padded.4} parent=0
    _
  %s7 = ssub.s32 1, %s5
  %s8 = scalar_select 0, %s7, %s5
  // Predicated region
  $region2: #{gcn_forward_padded.4} parent=0 // pred_check
    _
  $region3: #{gcn_forward_padded.4} parent=0 // pred_check_branch
    %10 = sbr.rel (0) target = $region5
  $region4: #{gcn_forward_padded.4} parent=0 // pred_region
    _
  $region5: #{gcn_forward_padded.4} parent=0 // pred_fallthru
    _
  // Predicated region
  $region6: #{gcn_forward_padded.4} parent=0 // pred_check
    _
  $region7: #{gcn_forward_padded.4} parent=0 // pred_check_branch
    %12 = sbr.rel (0) target = $region9
  $region8: #{gcn_forward_padded.4} parent=0 // pred_region
    _
  $region9: #{gcn_forward_padded.4} parent=0 // pred_fallthru
    _
  // Predicated region
  $region10: #{gcn_forward_padded.4} parent=0 // pred_check
    _
  $region11: #{gcn_forward_padded.4} parent=0 // pred_check_branch
    %14 = sbr.rel (0) target = $region13
  $region12: #{gcn_forward_padded.4} parent=0 // pred_region
    _
  $region13: #{gcn_forward_padded.4} parent=0 // pred_fallthru
    _
  // Predicated region
  $region14: #{gcn_forward_padded.4} parent=0 // pred_check
    _
  $region15: #{gcn_forward_padded.4} parent=0 // pred_check_branch
    %16 = sbr.rel (0) target = $region17
  $region16: #{gcn_forward_padded.4} parent=0 // pred_region
    _
  $region17: #{gcn_forward_padded.4} parent=0 // pred_fallthru
    _
  %p17 = scmp.eq.s32.totalorder 0, 0
  // Predicated region
  $region18: #{gcn_forward_padded.4} parent=0 // pred_check
    %p18 = pneg %p17
  $region19: #{gcn_forward_padded.4} parent=0 // pred_check_branch
    %20 = sbr.rel (%p18) target = $region21
  $region20: #{gcn_forward_padded.4} parent=0 // pred_region
    %21 = vst [vmem:[#allocation2] sm:$0xff] 0.0
    %22 = vst [vmem:[#allocation2 + $0x8] sm:$0xff] 0.0
    %23 = vst [vmem:[#allocation2 + $0x10] sm:$0xff] 0.0
    %24 = vst [vmem:[#allocation2 + $0x18] sm:$0xff] 0.0
    %25 = vst [vmem:[#allocation2 + $0x20] sm:$0xff] 0.0
    %26 = vst [vmem:[#allocation2 + $0x28] sm:$0xff] 0.0
    %27 = vst [vmem:[#allocation2 + $0x30] sm:$0xff] 0.0
    %28 = vst [vmem:[#allocation2 + $0x38] sm:$0xff] 0.0
    %29 = vst [vmem:[#allocation2 + $0x40] sm:$0xff] 0.0
    %30 = vst [vmem:[#allocation2 + $0x48] sm:$0xff] 0.0
    %31 = vst [vmem:[#allocation2 + $0x50] sm:$0xff] 0.0
    %32 = vst [vmem:[#allocation2 + $0x58] sm:$0xff] 0.0
    %33 = vst [vmem:[#allocation2 + $0x60] sm:$0xff] 0.0
    %34 = vst [vmem:[#allocation2 + $0x68] sm:$0xff] 0.0
    %35 = vst [vmem:[#allocation2 + $0x70] sm:$0xff] 0.0
    %36 = vst [vmem:[#allocation2 + $0x78] sm:$0xff] 0.0
  $region21: #{gcn_forward_padded.4} parent=0 // pred_fallthru
    _
  %v37 = vld [vmem:[#allocation2] sm:$0xff]
  %v38 = vld [vmem:[#allocation2 + $0x8] sm:$0xff]
  %v39 = vld [vmem:[#allocation2 + $0x10] sm:$0xff]
  %v40 = vld [vmem:[#allocation2 + $0x18] sm:$0xff]
  %v41 = vld [vmem:[#allocation2 + $0x20] sm:$0xff]
  %v42 = vld [vmem:[#allocation2 + $0x28] sm:$0xff]
  %v43 = vld [vmem:[#allocation2 + $0x30] sm:$0xff]
  %v44 = vld [vmem:[#allocation2 + $0x38] sm:$0xff]
  %v45 = vld [vmem:[#allocation2 + $0x40] sm:$0xff]
  %v46 = vld [vmem:[#allocation2 + $0x48] sm:$0xff]
  %v47 = vld [vmem:[#allocation2 + $0x50] sm:$0xff]
  %v48 = vld [vmem:[#allocation2 + $0x58] sm:$0xff]
  %v49 = vld [vmem:[#allocation2 + $0x60] sm:$0xff]
  %v50 = vld [vmem:[#allocation2 + $0x68] sm:$0xff]
  %v51 = vld [vmem:[#allocation2 + $0x70] sm:$0xff]
  %v52 = vld [vmem:[#allocation2 + $0x78] sm:$0xff]
  %v53 = vld [vmem:[%s0] sm:$0xff]
  %v54 = vld [vmem:[%s0 + $0x8] sm:$0xff]
  %v55 = vld [vmem:[%s0 + $0x10] sm:$0xff]
  %v56 = vld [vmem:[%s0 + $0x18] sm:$0xff]
  %v57 = vld [vmem:[%s0 + $0x20] sm:$0xff]
  %v58 = vld [vmem:[%s0 + $0x28] sm:$0xff]
  %v59 = vld [vmem:[%s0 + $0x30] sm:$0xff]
  %v60 = vld [vmem:[%s0 + $0x38] sm:$0xff]
  %v61 = vld [vmem:[%s0 + $0x40] sm:$0xff]
  %v62 = vld [vmem:[%s0 + $0x48] sm:$0xff]
  %v63 = vld [vmem:[%s0 + $0x50] sm:$0xff]
  %v64 = vld [vmem:[%s0 + $0x58] sm:$0xff]
  %v65 = vld [vmem:[%s0 + $0x60] sm:$0xff]
  %v66 = vld [vmem:[%s0 + $0x68] sm:$0xff]
  %v67 = vld [vmem:[%s0 + $0x70] sm:$0xff]
  %v68 = vld [vmem:[%s0 + $0x78] sm:$0xff]
  %v69 = vld [vmem:[%s1] sm:$0xff]
  %v70 = vld [vmem:[%s1 + $0x8] sm:$0xff]
  %v71 = vld [vmem:[%s1 + $0x10] sm:$0xff]
  %v72 = vld [vmem:[%s1 + $0x18] sm:$0xff]
  %v73 = vld [vmem:[%s1 + $0x20] sm:$0xff]
  %v74 = vld [vmem:[%s1 + $0x28] sm:$0xff]
  %v75 = vld [vmem:[%s1 + $0x30] sm:$0xff]
  %v76 = vld [vmem:[%s1 + $0x38] sm:$0xff]
  %v77 = vld [vmem:[%s1 + $0x40] sm:$0xff]
  %v78 = vld [vmem:[%s1 + $0x48] sm:$0xff]
  %v79 = vld [vmem:[%s1 + $0x50] sm:$0xff]
  %v80 = vld [vmem:[%s1 + $0x58] sm:$0xff]
  %v81 = vld [vmem:[%s1 + $0x60] sm:$0xff]
  %v82 = vld [vmem:[%s1 + $0x68] sm:$0xff]
  %v83 = vld [vmem:[%s1 + $0x70] sm:$0xff]
  %v84 = vld [vmem:[%s1 + $0x78] sm:$0xff]
  %85 = vmatprep.subr.mxu0 0.0
  %86 = vmatpush1.msra.mxu0 %v69
  %87 = vmatprep.subr.mxu0 0.0
  %88 = vmatpush1.msra.mxu0 %v70
  %89 = vmatprep.subr.mxu0 0.0
  %90 = vmatpush1.msra.mxu0 %v71
  %91 = vmatprep.subr.mxu0 0.0
  %92 = vmatpush1.msra.mxu0 %v72
  %93 = vmatprep.subr.mxu0 0.0
  %94 = vmatpush1.msra.mxu0 %v73
  %95 = vmatprep.subr.mxu0 0.0
  %96 = vmatpush1.msra.mxu0 %v74
  %97 = vmatprep.subr.mxu0 0.0
  %98 = vmatpush1.msra.mxu0 %v75
  %99 = vmatprep.subr.mxu0 0.0
  %100 = vmatpush1.msra.mxu0 %v76
  %101 = vmatprep.subr.mxu0 0.0
  %102 = vmatpush1.msra.mxu0 %v77
  %103 = vmatprep.subr.mxu0 0.0
  %104 = vmatpush1.msra.mxu0 %v78
  %105 = vmatprep.subr.mxu0 0.0
  %106 = vmatpush1.msra.mxu0 %v79
  %107 = vmatprep.subr.mxu0 0.0
  %108 = vmatpush1.msra.mxu0 %v80
  %109 = vmatprep.subr.mxu0 0.0
  %110 = vmatpush1.msra.mxu0 %v81
  %111 = vmatprep.subr.mxu0 0.0
  %112 = vmatpush1.msra.mxu0 %v82
  %113 = vmatprep.subr.mxu0 0.0
  %114 = vmatpush1.msra.mxu0 %v83
  %115 = vmatprep.subr.mxu0 0.0
  %116 = vmatpush1.msra.mxu0 %v84
  %117 = vmatprep.subr.mxu0 0.0
  %118 = vmatpush1.msra.mxu0 0.0
  %119 = vmatprep.subr.mxu0 0.0
  %120 = vmatpush1.msra.mxu0 0.0
  %121 = vmatprep.subr.mxu0 0.0
  %122 = vmatpush1.msra.mxu0 0.0
  %123 = vmatprep.subr.mxu0 0.0
  %124 = vmatpush1.msra.mxu0 0.0
  %125 = vmatprep.subr.mxu0 0.0
  %126 = vmatpush1.msra.mxu0 0.0
  %127 = vmatprep.subr.mxu0 0.0
  %128 = vmatpush1.msra.mxu0 0.0
  %129 = vmatprep.subr.mxu0 0.0
  %130 = vmatpush1.msra.mxu0 0.0
  %131 = vmatprep.subr.mxu0 0.0
  %132 = vmatpush1.msra.mxu0 0.0
  %133 = vmatprep.subr.mxu0 0.0
  %134 = vmatpush1.msra.mxu0 0.0
  %135 = vmatprep.subr.mxu0 0.0
  %136 = vmatpush1.msra.mxu0 0.0
  %137 = vmatprep.subr.mxu0 0.0
  %138 = vmatpush1.msra.mxu0 0.0
  %139 = vmatprep.subr.mxu0 0.0
  %140 = vmatpush1.msra.mxu0 0.0
  %141 = vmatprep.subr.mxu0 0.0
  %142 = vmatpush1.msra.mxu0 0.0
  %143 = vmatprep.subr.mxu0 0.0
  %144 = vmatpush1.msra.mxu0 0.0
  %145 = vmatprep.subr.mxu0 0.0
  %146 = vmatpush1.msra.mxu0 0.0
  %147 = vmatprep.subr.mxu0 0.0
  %148 = vmatpush1.msra.mxu0 0.0
  %149 = vmatprep.mubr.f32.mxu0 0.0
  %150 = vmatmul.mubr.f32.gmra.mrb[0].mxu0 %v53
  %v151 = vpop.f32.mrb[0].mxu0
  %v152 = vadd.f32 0.0, %v151
  %v153 = vpop.f32.mrb[0].mxu0
  %154 = vmatprep.mubr.f32.mxu0 0.0
  %155 = vmatmul.mubr.f32.gmra.mrb[0].mxu0 %v54
  %v156 = vpop.f32.mrb[0].mxu0
  %v157 = vadd.f32 0.0, %v156
  %v158 = vpop.f32.mrb[0].mxu0
  %159 = vmatprep.mubr.f32.mxu0 0.0
  %160 = vmatmul.mubr.f32.gmra.mrb[0].mxu0 %v55
  %v161 = vpop.f32.mrb[0].mxu0
  %v162 = vadd.f32 0.0, %v161
  %v163 = vpop.f32.mrb[0].mxu0
  %164 = vmatprep.mubr.f32.mxu0 0.0
  %165 = vmatmul.mubr.f32.gmra.mrb[0].mxu0 %v56
  %v166 = vpop.f32.mrb[0].mxu0
  %v167 = vadd.f32 0.0, %v166
  %v168 = vpop.f32.mrb[0].mxu0
  %169 = vmatprep.mubr.f32.mxu0 0.0
  %170 = vmatmul.mubr.f32.gmra.mrb[0].mxu0 %v57
  %v171 = vpop.f32.mrb[0].mxu0
  %v172 = vadd.f32 0.0, %v171
  %v173 = vpop.f32.mrb[0].mxu0
  %174 = vmatprep.mubr.f32.mxu0 0.0
  %175 = vmatmul.mubr.f32.gmra.mrb[0].mxu0 %v58
  %v176 = vpop.f32.mrb[0].mxu0
  %v177 = vadd.f32 0.0, %v176
  %v178 = vpop.f32.mrb[0].mxu0
  %179 = vmatprep.mubr.f32.mxu0 0.0
  %180 = vmatmul.mubr.f32.gmra.mrb[0].mxu0 %v59
  %v181 = vpop.f32.mrb[0].mxu0
  %v182 = vadd.f32 0.0, %v181
  %v183 = vpop.f32.mrb[0].mxu0
  %184 = vmatprep.mubr.f32.mxu0 0.0
  %185 = vmatmul.mubr.f32.gmra.mrb[0].mxu0 %v60
  %v186 = vpop.f32.mrb[0].mxu0
  %v187 = vadd.f32 0.0, %v186
  %v188 = vpop.f32.mrb[0].mxu0
  %189 = vmatprep.mubr.f32.mxu0 0.0
  %190 = vmatmul.mubr.f32.gmra.mrb[0].mxu0 %v61
  %v191 = vpop.f32.mrb[0].mxu0
  %v192 = vadd.f32 0.0, %v191
  %v193 = vpop.f32.mrb[0].mxu0
  %194 = vmatprep.mubr.f32.mxu0 0.0
  %195 = vmatmul.mubr.f32.gmra.mrb[0].mxu0 %v62
  %v196 = vpop.f32.mrb[0].mxu0
  %v197 = vadd.f32 0.0, %v196
  %v198 = vpop.f32.mrb[0].mxu0
  %199 = vmatprep.mubr.f32.mxu0 0.0
  %200 = vmatmul.mubr.f32.gmra.mrb[0].mxu0 %v63
  %v201 = vpop.f32.mrb[0].mxu0
  %v202 = vadd.f32 0.0, %v201
  %v203 = vpop.f32.mrb[0].mxu0
  %204 = vmatprep.mubr.f32.mxu0 0.0
  %205 = vmatmul.mubr.f32.gmra.mrb[0].mxu0 %v64
  %v206 = vpop.f32.mrb[0].mxu0
  %v207 = vadd.f32 0.0, %v206
  %v208 = vpop.f32.mrb[0].mxu0
  %209 = vmatprep.mubr.f32.mxu0 0.0
  %210 = vmatmul.mubr.f32.gmra.mrb[0].mxu0 %v65
  %v211 = vpop.f32.mrb[0].mxu0
  %v212 = vadd.f32 0.0, %v211
  %v213 = vpop.f32.mrb[0].mxu0
  %214 = vmatprep.mubr.f32.mxu0 0.0
  %215 = vmatmul.mubr.f32.gmra.mrb[0].mxu0 %v66
  %v216 = vpop.f32.mrb[0].mxu0
  %v217 = vadd.f32 0.0, %v216
  %v218 = vpop.f32.mrb[0].mxu0
  %219 = vmatprep.mubr.f32.mxu0 0.0
  %220 = vmatmul.mubr.f32.gmra.mrb[0].mxu0 %v67
  %v221 = vpop.f32.mrb[0].mxu0
  %v222 = vadd.f32 0.0, %v221
  %v223 = vpop.f32.mrb[0].mxu0
  %224 = vmatprep.mubr.f32.mxu0 0.0
  %225 = vmatmul.mubr.f32.gmra.mrb[0].mxu0 %v68
  %v226 = vpop.f32.mrb[0].mxu0
  %v227 = vadd.f32 0.0, %v226
  %v228 = vpop.f32.mrb[0].mxu0
  %229 = vdwg.mxu0
  %v230 = vadd.f32 %v37, %v152
  %v231 = vadd.f32 %v38, %v157
  %v232 = vadd.f32 %v39, %v162
  %v233 = vadd.f32 %v40, %v167
  %v234 = vadd.f32 %v41, %v172
  %v235 = vadd.f32 %v42, %v177
  %v236 = vadd.f32 %v43, %v182
  %v237 = vadd.f32 %v44, %v187
  %v238 = vadd.f32 %v45, %v192
  %v239 = vadd.f32 %v46, %v197
  %v240 = vadd.f32 %v47, %v202
  %v241 = vadd.f32 %v48, %v207
  %v242 = vadd.f32 %v49, %v212
  %v243 = vadd.f32 %v50, %v217
  %v244 = vadd.f32 %v51, %v222
  %v245 = vadd.f32 %v52, %v227
  %246 = vst [vmem:[#allocation2] sm:$0xff] %v230
  %247 = vst [vmem:[#allocation2 + $0x8] sm:$0xff] %v231
  %248 = vst [vmem:[#allocation2 + $0x10] sm:$0xff] %v232
  %249 = vst [vmem:[#allocation2 + $0x18] sm:$0xff] %v233
  %250 = vst [vmem:[#allocation2 + $0x20] sm:$0xff] %v234
  %251 = vst [vmem:[#allocation2 + $0x28] sm:$0xff] %v235
  %252 = vst [vmem:[#allocation2 + $0x30] sm:$0xff] %v236
  %253 = vst [vmem:[#allocation2 + $0x38] sm:$0xff] %v237
  %254 = vst [vmem:[#allocation2 + $0x40] sm:$0xff] %v238
  %255 = vst [vmem:[#allocation2 + $0x48] sm:$0xff] %v239
  %256 = vst [vmem:[#allocation2 + $0x50] sm:$0xff] %v240
  %257 = vst [vmem:[#allocation2 + $0x58] sm:$0xff] %v241
  %258 = vst [vmem:[#allocation2 + $0x60] sm:$0xff] %v242
  %259 = vst [vmem:[#allocation2 + $0x68] sm:$0xff] %v243
  %260 = vst [vmem:[#allocation2 + $0x70] sm:$0xff] %v244
  %261 = vst [vmem:[#allocation2 + $0x78] sm:$0xff] %v245
  // Predicated region
  $region22: #{gcn_forward_padded.4} parent=0 // pred_check
    %p262 = pneg %p17
  $region23: #{gcn_forward_padded.4} parent=0 // pred_check_branch
    %264 = sbr.rel (%p262) target = $region25
  $region24: #{gcn_forward_padded.4} parent=0 // pred_region
    %v265 = vld [vmem:[#allocation2] sm:$0xff]
    %v266 = vld [vmem:[#allocation2 + $0x8] sm:$0xff]
    %v267 = vld [vmem:[#allocation2 + $0x10] sm:$0xff]
    %v268 = vld [vmem:[#allocation2 + $0x18] sm:$0xff]
    %v269 = vld [vmem:[#allocation2 + $0x20] sm:$0xff]
    %v270 = vld [vmem:[#allocation2 + $0x28] sm:$0xff]
    %v271 = vld [vmem:[#allocation2 + $0x30] sm:$0xff]
    %v272 = vld [vmem:[#allocation2 + $0x38] sm:$0xff]
    %v273 = vld [vmem:[#allocation2 + $0x40] sm:$0xff]
    %v274 = vld [vmem:[#allocation2 + $0x48] sm:$0xff]
    %v275 = vld [vmem:[#allocation2 + $0x50] sm:$0xff]
    %v276 = vld [vmem:[#allocation2 + $0x58] sm:$0xff]
    %v277 = vld [vmem:[#allocation2 + $0x60] sm:$0xff]
    %v278 = vld [vmem:[#allocation2 + $0x68] sm:$0xff]
    %v279 = vld [vmem:[#allocation2 + $0x70] sm:$0xff]
    %v280 = vld [vmem:[#allocation2 + $0x78] sm:$0xff]
    %v281 = vld [vmem:[%s2] sm:$0x1]
    %v283 = vlaneseq
    %v284 = vshrl.u32 %v283, 7
    %v285 = vsub.s32 0, %v284
    %v286 = vrot.slane %v281, %v285
    %v288 = vadd.f32 %v265, %v286
    %v289 = vadd.f32 %v266, %v286
    %v290 = vadd.f32 %v267, %v286
    %v291 = vadd.f32 %v268, %v286
    %v292 = vadd.f32 %v269, %v286
    %v293 = vadd.f32 %v270, %v286
    %v294 = vadd.f32 %v271, %v286
    %v295 = vadd.f32 %v272, %v286
    %v296 = vadd.f32 %v273, %v286
    %v297 = vadd.f32 %v274, %v286
    %v298 = vadd.f32 %v275, %v286
    %v299 = vadd.f32 %v276, %v286
    %v300 = vadd.f32 %v277, %v286
    %v301 = vadd.f32 %v278, %v286
    %v302 = vadd.f32 %v279, %v286
    %v303 = vadd.f32 %v280, %v286
    %v304 = vmax.f32 %v288, 0.0
    %v305 = vmax.f32 %v289, 0.0
    %v306 = vmax.f32 %v290, 0.0
    %v307 = vmax.f32 %v291, 0.0
    %v308 = vmax.f32 %v292, 0.0
    %v309 = vmax.f32 %v293, 0.0
    %v310 = vmax.f32 %v294, 0.0
    %v311 = vmax.f32 %v295, 0.0
    %v312 = vmax.f32 %v296, 0.0
    %v313 = vmax.f32 %v297, 0.0
    %v314 = vmax.f32 %v298, 0.0
    %v315 = vmax.f32 %v299, 0.0
    %v316 = vmax.f32 %v300, 0.0
    %v317 = vmax.f32 %v301, 0.0
    %v318 = vmax.f32 %v302, 0.0
    %v319 = vmax.f32 %v303, 0.0
    %v320 = vld [vmem:[%s3] sm:$0xff]
    %v321 = vld [vmem:[%s3 + $0x8] sm:$0xff]
    %v322 = vld [vmem:[%s3 + $0x10] sm:$0xff]
    %v323 = vld [vmem:[%s3 + $0x18] sm:$0xff]
    %v324 = vld [vmem:[%s3 + $0x20] sm:$0xff]
    %v325 = vld [vmem:[%s3 + $0x28] sm:$0xff]
    %v326 = vld [vmem:[%s3 + $0x30] sm:$0xff]
    %v327 = vld [vmem:[%s3 + $0x38] sm:$0xff]
    %v328 = vld [vmem:[%s3 + $0x40] sm:$0xff]
    %v329 = vld [vmem:[%s3 + $0x48] sm:$0xff]
    %v330 = vld [vmem:[%s3 + $0x50] sm:$0xff]
    %v331 = vld [vmem:[%s3 + $0x58] sm:$0xff]
    %v332 = vld [vmem:[%s3 + $0x60] sm:$0xff]
    %v333 = vld [vmem:[%s3 + $0x68] sm:$0xff]
    %v334 = vld [vmem:[%s3 + $0x70] sm:$0xff]
    %v335 = vld [vmem:[%s3 + $0x78] sm:$0xff]
    %336 = vmatprep.subr.mxu0 0.0
    %337 = vmatpush1.msra.mxu0 %v320
    %338 = vmatprep.subr.mxu0 0.0
    %339 = vmatpush1.msra.mxu0 %v321
    %340 = vmatprep.subr.mxu0 0.0
    %341 = vmatpush1.msra.mxu0 %v322
    %342 = vmatprep.subr.mxu0 0.0
    %343 = vmatpush1.msra.mxu0 %v323
    %344 = vmatprep.subr.mxu0 0.0
    %345 = vmatpush1.msra.mxu0 %v324
    %346 = vmatprep.subr.mxu0 0.0
    %347 = vmatpush1.msra.mxu0 %v325
    %348 = vmatprep.subr.mxu0 0.0
    %349 = vmatpush1.msra.mxu0 %v326
    %350 = vmatprep.subr.mxu0 0.0
    %351 = vmatpush1.msra.mxu0 %v327
    %352 = vmatprep.subr.mxu0 0.0
    %353 = vmatpush1.msra.mxu0 %v328
    %354 = vmatprep.subr.mxu0 0.0
    %355 = vmatpush1.msra.mxu0 %v329
    %356 = vmatprep.subr.mxu0 0.0
    %357 = vmatpush1.msra.mxu0 %v330
    %358 = vmatprep.subr.mxu0 0.0
    %359 = vmatpush1.msra.mxu0 %v331
    %360 = vmatprep.subr.mxu0 0.0
    %361 = vmatpush1.msra.mxu0 %v332
    %362 = vmatprep.subr.mxu0 0.0
    %363 = vmatpush1.msra.mxu0 %v333
    %364 = vmatprep.subr.mxu0 0.0
    %365 = vmatpush1.msra.mxu0 %v334
    %366 = vmatprep.subr.mxu0 0.0
    %367 = vmatpush1.msra.mxu0 %v335
    %368 = vmatprep.subr.mxu0 0.0
    %369 = vmatpush1.msra.mxu0 0.0
    %370 = vmatprep.subr.mxu0 0.0
    %371 = vmatpush1.msra.mxu0 0.0
    %372 = vmatprep.subr.mxu0 0.0
    %373 = vmatpush1.msra.mxu0 0.0
    %374 = vmatprep.subr.mxu0 0.0
    %375 = vmatpush1.msra.mxu0 0.0
    %376 = vmatprep.subr.mxu0 0.0
    %377 = vmatpush1.msra.mxu0 0.0
    %378 = vmatprep.subr.mxu0 0.0
    %379 = vmatpush1.msra.mxu0 0.0
    %380 = vmatprep.subr.mxu0 0.0
    %381 = vmatpush1.msra.mxu0 0.0
    %382 = vmatprep.subr.mxu0 0.0
    %383 = vmatpush1.msra.mxu0 0.0
    %384 = vmatprep.subr.mxu0 0.0
    %385 = vmatpush1.msra.mxu0 0.0
    %386 = vmatprep.subr.mxu0 0.0
    %387 = vmatpush1.msra.mxu0 0.0
    %388 = vmatprep.subr.mxu0 0.0
    %389 = vmatpush1.msra.mxu0 0.0
    %390 = vmatprep.subr.mxu0 0.0
    %391 = vmatpush1.msra.mxu0 0.0
    %392 = vmatprep.subr.mxu0 0.0
    %393 = vmatpush1.msra.mxu0 0.0
    %394 = vmatprep.subr.mxu0 0.0
    %395 = vmatpush1.msra.mxu0 0.0
    %396 = vmatprep.subr.mxu0 0.0
    %397 = vmatpush1.msra.mxu0 0.0
    %398 = vmatprep.subr.mxu0 0.0
    %399 = vmatpush1.msra.mxu0 0.0
    %400 = vmatprep.mubr.f32.mxu0 0.0
    %401 = vmatmul.mubr.f32.gmra.mrb[0].mxu0 %v304
    %v402 = vpop.f32.mrb[0].mxu0
    %v403 = vadd.f32 0.0, %v402
    %v404 = vpop.f32.mrb[0].mxu0
    %405 = vmatprep.mubr.f32.mxu0 0.0
    %406 = vmatmul.mubr.f32.gmra.mrb[0].mxu0 %v305
    %v407 = vpop.f32.mrb[0].mxu0
    %v408 = vadd.f32 0.0, %v407
    %v409 = vpop.f32.mrb[0].mxu0
    %410 = vmatprep.mubr.f32.mxu0 0.0
    %411 = vmatmul.mubr.f32.gmra.mrb[0].mxu0 %v306
    %v412 = vpop.f32.mrb[0].mxu0
    %v413 = vadd.f32 0.0, %v412
    %v414 = vpop.f32.mrb[0].mxu0
    %415 = vmatprep.mubr.f32.mxu0 0.0
    %416 = vmatmul.mubr.f32.gmra.mrb[0].mxu0 %v307
    %v417 = vpop.f32.mrb[0].mxu0
    %v418 = vadd.f32 0.0, %v417
    %v419 = vpop.f32.mrb[0].mxu0
    %420 = vmatprep.mubr.f32.mxu0 0.0
    %421 = vmatmul.mubr.f32.gmra.mrb[0].mxu0 %v308
    %v422 = vpop.f32.mrb[0].mxu0
    %v423 = vadd.f32 0.0, %v422
    %v424 = vpop.f32.mrb[0].mxu0
    %425 = vmatprep.mubr.f32.mxu0 0.0
    %426 = vmatmul.mubr.f32.gmra.mrb[0].mxu0 %v309
    %v427 = vpop.f32.mrb[0].mxu0
    %v428 = vadd.f32 0.0, %v427
    %v429 = vpop.f32.mrb[0].mxu0
    %430 = vmatprep.mubr.f32.mxu0 0.0
    %431 = vmatmul.mubr.f32.gmra.mrb[0].mxu0 %v310
    %v432 = vpop.f32.mrb[0].mxu0
    %v433 = vadd.f32 0.0, %v432
    %v434 = vpop.f32.mrb[0].mxu0
    %435 = vmatprep.mubr.f32.mxu0 0.0
    %436 = vmatmul.mubr.f32.gmra.mrb[0].mxu0 %v311
    %v437 = vpop.f32.mrb[0].mxu0
    %v438 = vadd.f32 0.0, %v437
    %v439 = vpop.f32.mrb[0].mxu0
    %440 = vmatprep.mubr.f32.mxu0 0.0
    %441 = vmatmul.mubr.f32.gmra.mrb[0].mxu0 %v312
    %v442 = vpop.f32.mrb[0].mxu0
    %v443 = vadd.f32 0.0, %v442
    %v444 = vpop.f32.mrb[0].mxu0
    %445 = vmatprep.mubr.f32.mxu0 0.0
    %446 = vmatmul.mubr.f32.gmra.mrb[0].mxu0 %v313
    %v447 = vpop.f32.mrb[0].mxu0
    %v448 = vadd.f32 0.0, %v447
    %v449 = vpop.f32.mrb[0].mxu0
    %450 = vmatprep.mubr.f32.mxu0 0.0
    %451 = vmatmul.mubr.f32.gmra.mrb[0].mxu0 %v314
    %v452 = vpop.f32.mrb[0].mxu0
    %v453 = vadd.f32 0.0, %v452
    %v454 = vpop.f32.mrb[0].mxu0
    %455 = vmatprep.mubr.f32.mxu0 0.0
    %456 = vmatmul.mubr.f32.gmra.mrb[0].mxu0 %v315
    %v457 = vpop.f32.mrb[0].mxu0
    %v458 = vadd.f32 0.0, %v457
    %v459 = vpop.f32.mrb[0].mxu0
    %460 = vmatprep.mubr.f32.mxu0 0.0
    %461 = vmatmul.mubr.f32.gmra.mrb[0].mxu0 %v316
    %v462 = vpop.f32.mrb[0].mxu0
    %v463 = vadd.f32 0.0, %v462
    %v464 = vpop.f32.mrb[0].mxu0
    %465 = vmatprep.mubr.f32.mxu0 0.0
    %466 = vmatmul.mubr.f32.gmra.mrb[0].mxu0 %v317
    %v467 = vpop.f32.mrb[0].mxu0
    %v468 = vadd.f32 0.0, %v467
    %v469 = vpop.f32.mrb[0].mxu0
    %470 = vmatprep.mubr.f32.mxu0 0.0
    %471 = vmatmul.mubr.f32.gmra.mrb[0].mxu0 %v318
    %v472 = vpop.f32.mrb[0].mxu0
    %v473 = vadd.f32 0.0, %v472
    %v474 = vpop.f32.mrb[0].mxu0
    %475 = vmatprep.mubr.f32.mxu0 0.0
    %476 = vmatmul.mubr.f32.gmra.mrb[0].mxu0 %v319
    %v477 = vpop.f32.mrb[0].mxu0
    %v478 = vadd.f32 0.0, %v477
    %v479 = vpop.f32.mrb[0].mxu0
    %480 = vdwg.mxu0
    %481 = vst [vmem:[%s4] sm:$0xff] %v403
    %482 = vst [vmem:[%s4 + $0x8] sm:$0xff] %v408
    %483 = vst [vmem:[%s4 + $0x10] sm:$0xff] %v413
    %484 = vst [vmem:[%s4 + $0x18] sm:$0xff] %v418
    %485 = vst [vmem:[%s4 + $0x20] sm:$0xff] %v423
    %486 = vst [vmem:[%s4 + $0x28] sm:$0xff] %v428
    %487 = vst [vmem:[%s4 + $0x30] sm:$0xff] %v433
    %488 = vst [vmem:[%s4 + $0x38] sm:$0xff] %v438
    %489 = vst [vmem:[%s4 + $0x40] sm:$0xff] %v443
    %490 = vst [vmem:[%s4 + $0x48] sm:$0xff] %v448
    %491 = vst [vmem:[%s4 + $0x50] sm:$0xff] %v453
    %492 = vst [vmem:[%s4 + $0x58] sm:$0xff] %v458
    %493 = vst [vmem:[%s4 + $0x60] sm:$0xff] %v463
    %494 = vst [vmem:[%s4 + $0x68] sm:$0xff] %v468
    %495 = vst [vmem:[%s4 + $0x70] sm:$0xff] %v473
    %496 = vst [vmem:[%s4 + $0x78] sm:$0xff] %v478
  $region25: #{gcn_forward_padded.4} parent=0 // pred_fallthru
    _
  // Predicated region
  $region26: #{gcn_forward_padded.4} parent=0 // pred_check
    _
  $region27: #{gcn_forward_padded.4} parent=0 // pred_check_branch
    %498 = sbr.rel (0) target = $region29
  $region28: #{gcn_forward_padded.4} parent=0 // pred_region
    _
  $region29: #{gcn_forward_padded.4} parent=0 // pred_fallthru
    _
  // Predicated region
  $region30: #{gcn_forward_padded.4} parent=0 // pred_check
    _
  $region31: #{gcn_forward_padded.4} parent=0 // pred_check_branch
    %500 = sbr.rel (0) target = $region33
  $region32: #{gcn_forward_padded.4} parent=0 // pred_region
    _
  $region33: #{gcn_forward_padded.4} parent=0 // pred_fallthru
    _

</llo_original>
